<compile_context>
chip_gen: v6e
topology: v6e:2x2x1
jax: 0.10.0
libtpu: 0.0.40
codegen_flags: <defaults>
</compile_context>

<pallas_src>
import jax
import jax.numpy as jnp
from jax.experimental import pallas as pl
from jax.experimental.pallas import tpu as pltpu


# ---------------------------------------------------------------------------
# Fused kernel: in-kernel embedding gather + unrolled recurrence + batched head.
# ---------------------------------------------------------------------------
def fused_rnn_kernel(tok_ref,                       # SMEM (T*B,) int32 (scalar prefetch)
                     wih_ref, brnn_ref, whh_ref,    # VMEM inputs
                     h0_ref, wout_ref, bout_ref,
                     out_ref, hT_ref,               # outputs
                     y_scr, xg_scr):                # scratch
    B = h0_ref.shape[0]
    T = y_scr.shape[0] // B

    b_rnn = brnn_ref[...]                       # (1, H) f32  (b_ih + b_hh)
    whh = whh_ref[...]                          # (H, H) bf16 (hoisted out of loop)
    h_bf = h0_ref[...].astype(jnp.bfloat16)     # (B, H) bf16 matmul operand
    h_f32 = h0_ref[...]

    for t in range(T):                          # T small & static -> fully unrolled
        # Fused embedding gather: one_hot(x_t) @ W_ih^T  ==  row gather of W_ih^T.
        for b in range(B):
            xg_scr[pl.ds(b, 1), :] = wih_ref[pl.ds(tok_ref[t * B + b], 1), :]
        pre = (xg_scr[...] + b_rnn
               + jnp.dot(h_bf, whh, preferred_element_type=jnp.float32))
        h_f32 = jnp.tanh(pre)                   # f32 activation
        h_bf = h_f32.astype(jnp.bfloat16)
        y_scr[pl.ds(t * B, B), :] = h_bf        # stash Y row-block (bf16) for the head

    hT_ref[...] = h_f32                         # final hidden state written once

    # Batched output head over all T*B rows at once (lane-dense V).
    out_ref[...] = (
        jnp.dot(y_scr[...], wout_ref[...], preferred_element_type=jnp.float32)
        + bout_ref[...]
    )


def rnn_model_forward(inputs, state, params, vocab_size):
    """inputs: (B, T) int32 token ids; state: (1, B, H) f32.
    Returns (output (T*B, V) f32, new_state (1, B, H) f32)."""
    W_ih_T, b_rnn, W_hh_T_bf, W_out_T_bf, b_out = params
    B, T = inputs.shape
    H = W_hh_T_bf.shape[0]
    V = vocab_size

    tok = inputs.T.reshape(-1).astype(jnp.int32)   # (T*B,) time-major token ids
    h0 = state[0]                                  # (B, H)

    output, hT = pl.pallas_call(
        fused_rnn_kernel,
        out_shape=(
            jax.ShapeDtypeStruct((T * B, V), jnp.float32),
            jax.ShapeDtypeStruct((B, H), jnp.float32),
        ),
        grid_spec=pltpu.PrefetchScalarGridSpec(
            num_scalar_prefetch=1,                 # tok -> SMEM
            grid=(1,),
            in_specs=[
                pl.BlockSpec((V, H), lambda i, tok: (0, 0)),   # W_ih^T (f32, gathered)
                pl.BlockSpec((1, H), lambda i, tok: (0, 0)),   # b_ih + b_hh
                pl.BlockSpec((H, H), lambda i, tok: (0, 0)),   # W_hh^T (bf16)
                pl.BlockSpec((B, H), lambda i, tok: (0, 0)),   # h0
                pl.BlockSpec((H, V), lambda i, tok: (0, 0)),   # W_out^T (bf16)
                pl.BlockSpec((1, V), lambda i, tok: (0, 0)),   # b_out
            ],
            out_specs=(
                pl.BlockSpec((T * B, V), lambda i, tok: (0, 0)),  # logits
                pl.BlockSpec((B, H), lambda i, tok: (0, 0)),      # final hidden state
            ),
            scratch_shapes=[
                pltpu.VMEM((T * B, H), jnp.bfloat16),   # Y (flattened, bf16)
                pltpu.VMEM((B, H), jnp.float32),        # per-step gathered x_t rows
            ],
        ),
        compiler_params=pltpu.CompilerParams(
            dimension_semantics=("arbitrary",),
        ),
    )(tok, W_ih_T, b_rnn, W_hh_T_bf, h0, W_out_T_bf, b_out)

    return output, hT[None]  # state shape (1, B, H)


def init_params(key, vocab_size, num_hiddens):
    """Deterministic synthetic init mirroring nn.RNN / nn.Linear parameter shapes."""
    V, H = vocab_size, num_hiddens
    k = jax.random.split(key, 6)
    s = 1.0 / jnp.sqrt(H)
    # PyTorch shapes: weight_ih_l0 (H, V), weight_hh_l0 (H, H), biases (H,)
    W_ih = jax.random.uniform(k[0], (H, V), jnp.float32, -s, s)
    W_hh = jax.random.uniform(k[1], (H, H), jnp.float32, -s, s)
    b_ih = jax.random.uniform(k[2], (H,), jnp.float32, -s, s)
    b_hh = jax.random.uniform(k[3], (H,), jnp.float32, -s, s)
    # Linear: weight (V, H), bias (V,)
    W_out = jax.random.uniform(k[4], (V, H), jnp.float32, -s, s)
    b_out = jax.random.uniform(k[5], (V,), jnp.float32, -s, s)
    # Pre-transpose for kernel matmuls; fold the two RNN biases; cast MXU
    # operands to bf16 (intentional numerics tradeoff vs. PyTorch f32 parity —
    # accumulation/tanh stay f32 and tanh bounds the drift).
    return (
        W_ih.T,                              # (V, H) f32 embedding table
        (b_ih + b_hh)[None, :],              # (1, H) f32
        W_hh.T.astype(jnp.bfloat16),         # (H, H) bf16
        W_out.T.astype(jnp.bfloat16),        # (H, V) bf16
        b_out[None, :],                      # (1, V) f32
    )


def _reference_forward(inputs, state, params):
    """Pure-JAX reference with the same bf16-operand / f32-accum numerics."""
    W_ih_T, b_rnn, W_hh_T_bf, W_out_T_bf, b_out = params
    B, T = inputs.shape
    xw = jnp.take(W_ih_T, inputs.T, axis=0) + b_rnn          # (T, B, H) f32
    h = state[0]
    ys = []
    for t in range(T):
        pre = xw[t] + jnp.dot(h.astype(jnp.bfloat16), W_hh_T_bf,
                              preferred_element_type=jnp.float32)
        h = jnp.tanh(pre)
        ys.append(h.astype(jnp.bfloat16))
    Y = jnp.concatenate(ys, axis=0)                           # (T*B, H) bf16
    out = jnp.dot(Y, W_out_T_bf, preferred_element_type=jnp.float32) + b_out
    return out, h[None]


if __name__ == "__main__":
    vocab_size = 128
    num_hiddens = 128
    batch_size = 8
    num_steps = 8

    key = jax.random.PRNGKey(0)
    k_inp, k_par = jax.random.split(key)

    inputs = jax.random.randint(
        k_inp, (batch_size, num_steps), 0, vocab_size, jnp.int32)
    state = jnp.zeros((1, batch_size, num_hiddens), jnp.float32)  # begin_state()
    params = init_params(k_par, vocab_size, num_hiddens)

    output, new_state = rnn_model_forward(inputs, state, params, vocab_size)
    jax.block_until_ready((output, new_state))

    assert output.shape == (num_steps * batch_size, vocab_size)
    assert new_state.shape == (1, batch_size, num_hiddens)
    assert bool(jnp.all(jnp.isfinite(output)))

    ref_out, ref_state = _reference_forward(inputs, state, params)
    assert float(jnp.max(jnp.abs(output - ref_out))) < 5e-2
    assert float(jnp.max(jnp.abs(new_state - ref_state))) < 5e-2

    print("KERNEL_OK")
</pallas_src>

<mosaic_0001>
module attributes {stable_mosaic.version = 11 : i64} {
  func.func @fused_rnn_kernel(%arg0: i32, %arg1: memref<64xi32, #tpu.memory_space<smem>>, %arg2: memref<128x128xf32, #tpu.memory_space<vmem>>, %arg3: memref<1x128xf32, #tpu.memory_space<vmem>>, %arg4: memref<128x128xbf16, #tpu.memory_space<vmem>>, %arg5: memref<8x128xf32, #tpu.memory_space<vmem>>, %arg6: memref<128x128xbf16, #tpu.memory_space<vmem>>, %arg7: memref<1x128xf32, #tpu.memory_space<vmem>>, %arg8: memref<64x128xf32, #tpu.memory_space<vmem>>, %arg9: memref<8x128xf32, #tpu.memory_space<vmem>>, %arg10: memref<64x128xbf16, #tpu.memory_space<vmem>>, %arg11: memref<8x128xf32, #tpu.memory_space<vmem>>) attributes {dimension_semantics = [#tpu.dimension_semantics<arbitrary>], iteration_bounds = array<i64: 1>, scalar_prefetch = 1 : i64, scratch_operands = 2 : i64, tpu.core_type = #tpu.core_type<tc>, window_params = [{pipeline_mode = #tpu.pipeline_mode<synchronous>, transform_indices = @transform_0, window_bounds = array<i64: 128, 128>}, {pipeline_mode = #tpu.pipeline_mode<synchronous>, transform_indices = @transform_1, window_bounds = array<i64: 1, 128>}, {pipeline_mode = #tpu.pipeline_mode<synchronous>, transform_indices = @transform_2, window_bounds = array<i64: 128, 128>}, {pipeline_mode = #tpu.pipeline_mode<synchronous>, transform_indices = @transform_3, window_bounds = array<i64: 8, 128>}, {pipeline_mode = #tpu.pipeline_mode<synchronous>, transform_indices = @transform_4, window_bounds = array<i64: 128, 128>}, {pipeline_mode = #tpu.pipeline_mode<synchronous>, transform_indices = @transform_5, window_bounds = array<i64: 1, 128>}, {pipeline_mode = #tpu.pipeline_mode<synchronous>, transform_indices = @transform_6, window_bounds = array<i64: 64, 128>}, {pipeline_mode = #tpu.pipeline_mode<synchronous>, transform_indices = @transform_7, window_bounds = array<i64: 8, 128>}]} {
    %c0 = arith.constant 0 : index
    %c0_0 = arith.constant 0 : index
    %0 = vector.load %arg3[%c0, %c0_0] : memref<1x128xf32, #tpu.memory_space<vmem>>, vector<1x128xf32>
    %c0_1 = arith.constant 0 : index
    %c0_2 = arith.constant 0 : index
    %1 = vector.load %arg4[%c0_1, %c0_2] : memref<128x128xbf16, #tpu.memory_space<vmem>>, vector<128x128xbf16>
    %c0_3 = arith.constant 0 : index
    %c0_4 = arith.constant 0 : index
    %2 = vector.load %arg5[%c0_3, %c0_4] : memref<8x128xf32, #tpu.memory_space<vmem>>, vector<8x128xf32>
    %3 = arith.truncf %2 : vector<8x128xf32> to vector<8x128xbf16>
    %c0_5 = arith.constant 0 : index
    %4 = memref.load %arg1[%c0_5] : memref<64xi32, #tpu.memory_space<smem>>
    %5 = arith.index_cast %4 : i32 to index
    %c0_6 = arith.constant 0 : index
    %6 = vector.load %arg2[%5, %c0_6] : memref<128x128xf32, #tpu.memory_space<vmem>>, vector<1x128xf32>
    %c0_7 = arith.constant 0 : index
    %c0_8 = arith.constant 0 : index
    %7 = vector.load %arg11[%c0_7, %c0_8] : memref<8x128xf32, #tpu.memory_space<vmem>>, vector<1x128xf32>
    tpu.vector_store %arg11[%c0_7, %c0_8], %6 {strides = array<i32>} : memref<8x128xf32, #tpu.memory_space<vmem>>, vector<1x128xf32>,
    %c1 = arith.constant 1 : index
    %8 = memref.load %arg1[%c1] : memref<64xi32, #tpu.memory_space<smem>>
    %9 = arith.index_cast %8 : i32 to index
    %c0_9 = arith.constant 0 : index
    %10 = vector.load %arg2[%9, %c0_9] : memref<128x128xf32, #tpu.memory_space<vmem>>, vector<1x128xf32>
    %c1_10 = arith.constant 1 : index
    %c0_11 = arith.constant 0 : index
    %11 = vector.load %arg11[%c1_10, %c0_11] : memref<8x128xf32, #tpu.memory_space<vmem>>, vector<1x128xf32>
    tpu.vector_store %arg11[%c1_10, %c0_11], %10 {strides = array<i32>} : memref<8x128xf32, #tpu.memory_space<vmem>>, vector<1x128xf32>,
    %c2 = arith.constant 2 : index
    %12 = memref.load %arg1[%c2] : memref<64xi32, #tpu.memory_space<smem>>
    %13 = arith.index_cast %12 : i32 to index
    %c0_12 = arith.constant 0 : index
    %14 = vector.load %arg2[%13, %c0_12] : memref<128x128xf32, #tpu.memory_space<vmem>>, vector<1x128xf32>
    %c2_13 = arith.constant 2 : index
    %c0_14 = arith.constant 0 : index
    %15 = vector.load %arg11[%c2_13, %c0_14] : memref<8x128xf32, #tpu.memory_space<vmem>>, vector<1x128xf32>
    tpu.vector_store %arg11[%c2_13, %c0_14], %14 {strides = array<i32>} : memref<8x128xf32, #tpu.memory_space<vmem>>, vector<1x128xf32>,
    %c3 = arith.constant 3 : index
    %16 = memref.load %arg1[%c3] : memref<64xi32, #tpu.memory_space<smem>>
    %17 = arith.index_cast %16 : i32 to index
    %c0_15 = arith.constant 0 : index
    %18 = vector.load %arg2[%17, %c0_15] : memref<128x128xf32, #tpu.memory_space<vmem>>, vector<1x128xf32>
    %c3_16 = arith.constant 3 : index
    %c0_17 = arith.constant 0 : index
    %19 = vector.load %arg11[%c3_16, %c0_17] : memref<8x128xf32, #tpu.memory_space<vmem>>, vector<1x128xf32>
    tpu.vector_store %arg11[%c3_16, %c0_17], %18 {strides = array<i32>} : memref<8x128xf32, #tpu.memory_space<vmem>>, vector<1x128xf32>,
    %c4 = arith.constant 4 : index
    %20 = memref.load %arg1[%c4] : memref<64xi32, #tpu.memory_space<smem>>
    %21 = arith.index_cast %20 : i32 to index
    %c0_18 = arith.constant 0 : index
    %22 = vector.load %arg2[%21, %c0_18] : memref<128x128xf32, #tpu.memory_space<vmem>>, vector<1x128xf32>
    %c4_19 = arith.constant 4 : index
    %c0_20 = arith.constant 0 : index
    %23 = vector.load %arg11[%c4_19, %c0_20] : memref<8x128xf32, #tpu.memory_space<vmem>>, vector<1x128xf32>
    tpu.vector_store %arg11[%c4_19, %c0_20], %22 {strides = array<i32>} : memref<8x128xf32, #tpu.memory_space<vmem>>, vector<1x128xf32>,
    %c5 = arith.constant 5 : index
    %24 = memref.load %arg1[%c5] : memref<64xi32, #tpu.memory_space<smem>>
    %25 = arith.index_cast %24 : i32 to index
    %c0_21 = arith.constant 0 : index
    %26 = vector.load %arg2[%25, %c0_21] : memref<128x128xf32, #tpu.memory_space<vmem>>, vector<1x128xf32>
    %c5_22 = arith.constant 5 : index
    %c0_23 = arith.constant 0 : index
    %27 = vector.load %arg11[%c5_22, %c0_23] : memref<8x128xf32, #tpu.memory_space<vmem>>, vector<1x128xf32>
    tpu.vector_store %arg11[%c5_22, %c0_23], %26 {strides = array<i32>} : memref<8x128xf32, #tpu.memory_space<vmem>>, vector<1x128xf32>,
    %c6 = arith.constant 6 : index
    %28 = memref.load %arg1[%c6] : memref<64xi32, #tpu.memory_space<smem>>
    %29 = arith.index_cast %28 : i32 to index
    %c0_24 = arith.constant 0 : index
    %30 = vector.load %arg2[%29, %c0_24] : memref<128x128xf32, #tpu.memory_space<vmem>>, vector<1x128xf32>
    %c6_25 = arith.constant 6 : index
    %c0_26 = arith.constant 0 : index
    %31 = vector.load %arg11[%c6_25, %c0_26] : memref<8x128xf32, #tpu.memory_space<vmem>>, vector<1x128xf32>
    tpu.vector_store %arg11[%c6_25, %c0_26], %30 {strides = array<i32>} : memref<8x128xf32, #tpu.memory_space<vmem>>, vector<1x128xf32>,
    %c7 = arith.constant 7 : index
    %32 = memref.load %arg1[%c7] : memref<64xi32, #tpu.memory_space<smem>>
    %33 = arith.index_cast %32 : i32 to index
    %c0_27 = arith.constant 0 : index
    %34 = vector.load %arg2[%33, %c0_27] : memref<128x128xf32, #tpu.memory_space<vmem>>, vector<1x128xf32>
    %c7_28 = arith.constant 7 : index
    %c0_29 = arith.constant 0 : index
    %35 = vector.load %arg11[%c7_28, %c0_29] : memref<8x128xf32, #tpu.memory_space<vmem>>, vector<1x128xf32>
    tpu.vector_store %arg11[%c7_28, %c0_29], %34 {strides = array<i32>} : memref<8x128xf32, #tpu.memory_space<vmem>>, vector<1x128xf32>,
    %c0_30 = arith.constant 0 : index
    %c0_31 = arith.constant 0 : index
    %36 = vector.load %arg11[%c0_30, %c0_31] : memref<8x128xf32, #tpu.memory_space<vmem>>, vector<8x128xf32>
    %37 = vector.broadcast %0 : vector<1x128xf32> to vector<8x128xf32>
    %38 = arith.addf %36, %37 : vector<8x128xf32>
    %cst = arith.constant dense<0.000000e+00> : vector<8x128xf32>
    %39 = tpu.matmul %3, %1, %cst {dimension_numbers = #tpu.dot_dimension_numbers<[1], [0], [0], [1], [0, 0, 1, 1], [], []>} : vector<8x128xbf16>, vector<128x128xbf16>, vector<8x128xf32> -> vector<8x128xf32>
    %40 = arith.addf %38, %39 : vector<8x128xf32>
    %41 = math.tanh %40 : vector<8x128xf32>
    %42 = arith.truncf %41 : vector<8x128xf32> to vector<8x128xbf16>
    %c0_32 = arith.constant 0 : index
    %c0_33 = arith.constant 0 : index
    %43 = vector.load %arg10[%c0_32, %c0_33] : memref<64x128xbf16, #tpu.memory_space<vmem>>, vector<8x128xbf16>
    tpu.vector_store %arg10[%c0_32, %c0_33], %42 {strides = array<i32>} : memref<64x128xbf16, #tpu.memory_space<vmem>>, vector<8x128xbf16>,
    %c8 = arith.constant 8 : index
    %44 = memref.load %arg1[%c8] : memref<64xi32, #tpu.memory_space<smem>>
    %45 = arith.index_cast %44 : i32 to index
    %c0_34 = arith.constant 0 : index
    %46 = vector.load %arg2[%45, %c0_34] : memref<128x128xf32, #tpu.memory_space<vmem>>, vector<1x128xf32>
    %c0_35 = arith.constant 0 : index
    %c0_36 = arith.constant 0 : index
    %47 = vector.load %arg11[%c0_35, %c0_36] : memref<8x128xf32, #tpu.memory_space<vmem>>, vector<1x128xf32>
    tpu.vector_store %arg11[%c0_35, %c0_36], %46 {strides = array<i32>} : memref<8x128xf32, #tpu.memory_space<vmem>>, vector<1x128xf32>,
    %c9 = arith.constant 9 : index
    %48 = memref.load %arg1[%c9] : memref<64xi32, #tpu.memory_space<smem>>
    %49 = arith.index_cast %48 : i32 to index
    %c0_37 = arith.constant 0 : index
    %50 = vector.load %arg2[%49, %c0_37] : memref<128x128xf32, #tpu.memory_space<vmem>>, vector<1x128xf32>
    %c1_38 = arith.constant 1 : index
    %c0_39 = arith.constant 0 : index
    %51 = vector.load %arg11[%c1_38, %c0_39] : memref<8x128xf32, #tpu.memory_space<vmem>>, vector<1x128xf32>
    tpu.vector_store %arg11[%c1_38, %c0_39], %50 {strides = array<i32>} : memref<8x128xf32, #tpu.memory_space<vmem>>, vector<1x128xf32>,
    %c10 = arith.constant 10 : index
    %52 = memref.load %arg1[%c10] : memref<64xi32, #tpu.memory_space<smem>>
    %53 = arith.index_cast %52 : i32 to index
    %c0_40 = arith.constant 0 : index
    %54 = vector.load %arg2[%53, %c0_40] : memref<128x128xf32, #tpu.memory_space<vmem>>, vector<1x128xf32>
    %c2_41 = arith.constant 2 : index
    %c0_42 = arith.constant 0 : index
    %55 = vector.load %arg11[%c2_41, %c0_42] : memref<8x128xf32, #tpu.memory_space<vmem>>, vector<1x128xf32>
    tpu.vector_store %arg11[%c2_41, %c0_42], %54 {strides = array<i32>} : memref<8x128xf32, #tpu.memory_space<vmem>>, vector<1x128xf32>,
    %c11 = arith.constant 11 : index
    %56 = memref.load %arg1[%c11] : memref<64xi32, #tpu.memory_space<smem>>
    %57 = arith.index_cast %56 : i32 to index
    %c0_43 = arith.constant 0 : index
    %58 = vector.load %arg2[%57, %c0_43] : memref<128x128xf32, #tpu.memory_space<vmem>>, vector<1x128xf32>
    %c3_44 = arith.constant 3 : index
    %c0_45 = arith.constant 0 : index
    %59 = vector.load %arg11[%c3_44, %c0_45] : memref<8x128xf32, #tpu.memory_space<vmem>>, vector<1x128xf32>
    tpu.vector_store %arg11[%c3_44, %c0_45], %58 {strides = array<i32>} : memref<8x128xf32, #tpu.memory_space<vmem>>, vector<1x128xf32>,
    %c12 = arith.constant 12 : index
    %60 = memref.load %arg1[%c12] : memref<64xi32, #tpu.memory_space<smem>>
    %61 = arith.index_cast %60 : i32 to index
    %c0_46 = arith.constant 0 : index
    %62 = vector.load %arg2[%61, %c0_46] : memref<128x128xf32, #tpu.memory_space<vmem>>, vector<1x128xf32>
    %c4_47 = arith.constant 4 : index
    %c0_48 = arith.constant 0 : index
    %63 = vector.load %arg11[%c4_47, %c0_48] : memref<8x128xf32, #tpu.memory_space<vmem>>, vector<1x128xf32>
    tpu.vector_store %arg11[%c4_47, %c0_48], %62 {strides = array<i32>} : memref<8x128xf32, #tpu.memory_space<vmem>>, vector<1x128xf32>,
    %c13 = arith.constant 13 : index
    %64 = memref.load %arg1[%c13] : memref<64xi32, #tpu.memory_space<smem>>
    %65 = arith.index_cast %64 : i32 to index
    %c0_49 = arith.constant 0 : index
    %66 = vector.load %arg2[%65, %c0_49] : memref<128x128xf32, #tpu.memory_space<vmem>>, vector<1x128xf32>
    %c5_50 = arith.constant 5 : index
    %c0_51 = arith.constant 0 : index
    %67 = vector.load %arg11[%c5_50, %c0_51] : memref<8x128xf32, #tpu.memory_space<vmem>>, vector<1x128xf32>
    tpu.vector_store %arg11[%c5_50, %c0_51], %66 {strides = array<i32>} : memref<8x128xf32, #tpu.memory_space<vmem>>, vector<1x128xf32>,
    %c14 = arith.constant 14 : index
    %68 = memref.load %arg1[%c14] : memref<64xi32, #tpu.memory_space<smem>>
    %69 = arith.index_cast %68 : i32 to index
    %c0_52 = arith.constant 0 : index
    %70 = vector.load %arg2[%69, %c0_52] : memref<128x128xf32, #tpu.memory_space<vmem>>, vector<1x128xf32>
    %c6_53 = arith.constant 6 : index
    %c0_54 = arith.constant 0 : index
    %71 = vector.load %arg11[%c6_53, %c0_54] : memref<8x128xf32, #tpu.memory_space<vmem>>, vector<1x128xf32>
    tpu.vector_store %arg11[%c6_53, %c0_54], %70 {strides = array<i32>} : memref<8x128xf32, #tpu.memory_space<vmem>>, vector<1x128xf32>,
    %c15 = arith.constant 15 : index
    %72 = memref.load %arg1[%c15] : memref<64xi32, #tpu.memory_space<smem>>
    %73 = arith.index_cast %72 : i32 to index
    %c0_55 = arith.constant 0 : index
    %74 = vector.load %arg2[%73, %c0_55] : memref<128x128xf32, #tpu.memory_space<vmem>>, vector<1x128xf32>
    %c7_56 = arith.constant 7 : index
    %c0_57 = arith.constant 0 : index
    %75 = vector.load %arg11[%c7_56, %c0_57] : memref<8x128xf32, #tpu.memory_space<vmem>>, vector<1x128xf32>
    tpu.vector_store %arg11[%c7_56, %c0_57], %74 {strides = array<i32>} : memref<8x128xf32, #tpu.memory_space<vmem>>, vector<1x128xf32>,
    %c0_58 = arith.constant 0 : index
    %c0_59 = arith.constant 0 : index
    %76 = vector.load %arg11[%c0_58, %c0_59] : memref<8x128xf32, #tpu.memory_space<vmem>>, vector<8x128xf32>
    %77 = vector.broadcast %0 : vector<1x128xf32> to vector<8x128xf32>
    %78 = arith.addf %76, %77 : vector<8x128xf32>
    %cst_60 = arith.constant dense<0.000000e+00> : vector<8x128xf32>
    %79 = tpu.matmul %42, %1, %cst_60 {dimension_numbers = #tpu.dot_dimension_numbers<[1], [0], [0], [1], [0, 0, 1, 1], [], []>} : vector<8x128xbf16>, vector<128x128xbf16>, vector<8x128xf32> -> vector<8x128xf32>
    %80 = arith.addf %78, %79 : vector<8x128xf32>
    %81 = math.tanh %80 : vector<8x128xf32>
    %82 = arith.truncf %81 : vector<8x128xf32> to vector<8x128xbf16>
    %c8_61 = arith.constant 8 : index
    %c0_62 = arith.constant 0 : index
    %83 = vector.load %arg10[%c8_61, %c0_62] : memref<64x128xbf16, #tpu.memory_space<vmem>>, vector<8x128xbf16>
    tpu.vector_store %arg10[%c8_61, %c0_62], %82 {strides = array<i32>} : memref<64x128xbf16, #tpu.memory_space<vmem>>, vector<8x128xbf16>,
    %c16 = arith.constant 16 : index
    %84 = memref.load %arg1[%c16] : memref<64xi32, #tpu.memory_space<smem>>
    %85 = arith.index_cast %84 : i32 to index
    %c0_63 = arith.constant 0 : index
    %86 = vector.load %arg2[%85, %c0_63] : memref<128x128xf32, #tpu.memory_space<vmem>>, vector<1x128xf32>
    %c0_64 = arith.constant 0 : index
    %c0_65 = arith.constant 0 : index
    %87 = vector.load %arg11[%c0_64, %c0_65] : memref<8x128xf32, #tpu.memory_space<vmem>>, vector<1x128xf32>
    tpu.vector_store %arg11[%c0_64, %c0_65], %86 {strides = array<i32>} : memref<8x128xf32, #tpu.memory_space<vmem>>, vector<1x128xf32>,
    %c17 = arith.constant 17 : index
    %88 = memref.load %arg1[%c17] : memref<64xi32, #tpu.memory_space<smem>>
    %89 = arith.index_cast %88 : i32 to index
    %c0_66 = arith.constant 0 : index
    %90 = vector.load %arg2[%89, %c0_66] : memref<128x128xf32, #tpu.memory_space<vmem>>, vector<1x128xf32>
    %c1_67 = arith.constant 1 : index
    %c0_68 = arith.constant 0 : index
    %91 = vector.load %arg11[%c1_67, %c0_68] : memref<8x128xf32, #tpu.memory_space<vmem>>, vector<1x128xf32>
    tpu.vector_store %arg11[%c1_67, %c0_68], %90 {strides = array<i32>} : memref<8x128xf32, #tpu.memory_space<vmem>>, vector<1x128xf32>,
    %c18 = arith.constant 18 : index
    %92 = memref.load %arg1[%c18] : memref<64xi32, #tpu.memory_space<smem>>
    %93 = arith.index_cast %92 : i32 to index
    %c0_69 = arith.constant 0 : index
    %94 = vector.load %arg2[%93, %c0_69] : memref<128x128xf32, #tpu.memory_space<vmem>>, vector<1x128xf32>
    %c2_70 = arith.constant 2 : index
    %c0_71 = arith.constant 0 : index
    %95 = vector.load %arg11[%c2_70, %c0_71] : memref<8x128xf32, #tpu.memory_space<vmem>>, vector<1x128xf32>
    tpu.vector_store %arg11[%c2_70, %c0_71], %94 {strides = array<i32>} : memref<8x128xf32, #tpu.memory_space<vmem>>, vector<1x128xf32>,
    %c19 = arith.constant 19 : index
    %96 = memref.load %arg1[%c19] : memref<64xi32, #tpu.memory_space<smem>>
    %97 = arith.index_cast %96 : i32 to index
    %c0_72 = arith.constant 0 : index
    %98 = vector.load %arg2[%97, %c0_72] : memref<128x128xf32, #tpu.memory_space<vmem>>, vector<1x128xf32>
    %c3_73 = arith.constant 3 : index
    %c0_74 = arith.constant 0 : index
    %99 = vector.load %arg11[%c3_73, %c0_74] : memref<8x128xf32, #tpu.memory_space<vmem>>, vector<1x128xf32>
    tpu.vector_store %arg11[%c3_73, %c0_74], %98 {strides = array<i32>} : memref<8x128xf32, #tpu.memory_space<vmem>>, vector<1x128xf32>,
    %c20 = arith.constant 20 : index
    %100 = memref.load %arg1[%c20] : memref<64xi32, #tpu.memory_space<smem>>
    %101 = arith.index_cast %100 : i32 to index
    %c0_75 = arith.constant 0 : index
    %102 = vector.load %arg2[%101, %c0_75] : memref<128x128xf32, #tpu.memory_space<vmem>>, vector<1x128xf32>
    %c4_76 = arith.constant 4 : index
    %c0_77 = arith.constant 0 : index
    %103 = vector.load %arg11[%c4_76, %c0_77] : memref<8x128xf32, #tpu.memory_space<vmem>>, vector<1x128xf32>
    tpu.vector_store %arg11[%c4_76, %c0_77], %102 {strides = array<i32>} : memref<8x128xf32, #tpu.memory_space<vmem>>, vector<1x128xf32>,
    %c21 = arith.constant 21 : index
    %104 = memref.load %arg1[%c21] : memref<64xi32, #tpu.memory_space<smem>>
    %105 = arith.index_cast %104 : i32 to index
    %c0_78 = arith.constant 0 : index
    %106 = vector.load %arg2[%105, %c0_78] : memref<128x128xf32, #tpu.memory_space<vmem>>, vector<1x128xf32>
    %c5_79 = arith.constant 5 : index
    %c0_80 = arith.constant 0 : index
    %107 = vector.load %arg11[%c5_79, %c0_80] : memref<8x128xf32, #tpu.memory_space<vmem>>, vector<1x128xf32>
    tpu.vector_store %arg11[%c5_79, %c0_80], %106 {strides = array<i32>} : memref<8x128xf32, #tpu.memory_space<vmem>>, vector<1x128xf32>,
    %c22 = arith.constant 22 : index
    %108 = memref.load %arg1[%c22] : memref<64xi32, #tpu.memory_space<smem>>
    %109 = arith.index_cast %108 : i32 to index
    %c0_81 = arith.constant 0 : index
    %110 = vector.load %arg2[%109, %c0_81] : memref<128x128xf32, #tpu.memory_space<vmem>>, vector<1x128xf32>
    %c6_82 = arith.constant 6 : index
    %c0_83 = arith.constant 0 : index
    %111 = vector.load %arg11[%c6_82, %c0_83] : memref<8x128xf32, #tpu.memory_space<vmem>>, vector<1x128xf32>
    tpu.vector_store %arg11[%c6_82, %c0_83], %110 {strides = array<i32>} : memref<8x128xf32, #tpu.memory_space<vmem>>, vector<1x128xf32>,
    %c23 = arith.constant 23 : index
    %112 = memref.load %arg1[%c23] : memref<64xi32, #tpu.memory_space<smem>>
    %113 = arith.index_cast %112 : i32 to index
    %c0_84 = arith.constant 0 : index
    %114 = vector.load %arg2[%113, %c0_84] : memref<128x128xf32, #tpu.memory_space<vmem>>, vector<1x128xf32>
    %c7_85 = arith.constant 7 : index
    %c0_86 = arith.constant 0 : index
    %115 = vector.load %arg11[%c7_85, %c0_86] : memref<8x128xf32, #tpu.memory_space<vmem>>, vector<1x128xf32>
    tpu.vector_store %arg11[%c7_85, %c0_86], %114 {strides = array<i32>} : memref<8x128xf32, #tpu.memory_space<vmem>>, vector<1x128xf32>,
    %c0_87 = arith.constant 0 : index
    %c0_88 = arith.constant 0 : index
    %116 = vector.load %arg11[%c0_87, %c0_88] : memref<8x128xf32, #tpu.memory_space<vmem>>, vector<8x128xf32>
    %117 = vector.broadcast %0 : vector<1x128xf32> to vector<8x128xf32>
    %118 = arith.addf %116, %117 : vector<8x128xf32>
    %cst_89 = arith.constant dense<0.000000e+00> : vector<8x128xf32>
    %119 = tpu.matmul %82, %1, %cst_89 {dimension_numbers = #tpu.dot_dimension_numbers<[1], [0], [0], [1], [0, 0, 1, 1], [], []>} : vector<8x128xbf16>, vector<128x128xbf16>, vector<8x128xf32> -> vector<8x128xf32>
    %120 = arith.addf %118, %119 : vector<8x128xf32>
    %121 = math.tanh %120 : vector<8x128xf32>
    %122 = arith.truncf %121 : vector<8x128xf32> to vector<8x128xbf16>
    %c16_90 = arith.constant 16 : index
    %c0_91 = arith.constant 0 : index
    %123 = vector.load %arg10[%c16_90, %c0_91] : memref<64x128xbf16, #tpu.memory_space<vmem>>, vector<8x128xbf16>
    tpu.vector_store %arg10[%c16_90, %c0_91], %122 {strides = array<i32>} : memref<64x128xbf16, #tpu.memory_space<vmem>>, vector<8x128xbf16>,
    %c24 = arith.constant 24 : index
    %124 = memref.load %arg1[%c24] : memref<64xi32, #tpu.memory_space<smem>>
    %125 = arith.index_cast %124 : i32 to index
    %c0_92 = arith.constant 0 : index
    %126 = vector.load %arg2[%125, %c0_92] : memref<128x128xf32, #tpu.memory_space<vmem>>, vector<1x128xf32>
    %c0_93 = arith.constant 0 : index
    %c0_94 = arith.constant 0 : index
    %127 = vector.load %arg11[%c0_93, %c0_94] : memref<8x128xf32, #tpu.memory_space<vmem>>, vector<1x128xf32>
    tpu.vector_store %arg11[%c0_93, %c0_94], %126 {strides = array<i32>} : memref<8x128xf32, #tpu.memory_space<vmem>>, vector<1x128xf32>,
    %c25 = arith.constant 25 : index
    %128 = memref.load %arg1[%c25] : memref<64xi32, #tpu.memory_space<smem>>
    %129 = arith.index_cast %128 : i32 to index
    %c0_95 = arith.constant 0 : index
    %130 = vector.load %arg2[%129, %c0_95] : memref<128x128xf32, #tpu.memory_space<vmem>>, vector<1x128xf32>
    %c1_96 = arith.constant 1 : index
    %c0_97 = arith.constant 0 : index
    %131 = vector.load %arg11[%c1_96, %c0_97] : memref<8x128xf32, #tpu.memory_space<vmem>>, vector<1x128xf32>
    tpu.vector_store %arg11[%c1_96, %c0_97], %130 {strides = array<i32>} : memref<8x128xf32, #tpu.memory_space<vmem>>, vector<1x128xf32>,
    %c26 = arith.constant 26 : index
    %132 = memref.load %arg1[%c26] : memref<64xi32, #tpu.memory_space<smem>>
    %133 = arith.index_cast %132 : i32 to index
    %c0_98 = arith.constant 0 : index
    %134 = vector.load %arg2[%133, %c0_98] : memref<128x128xf32, #tpu.memory_space<vmem>>, vector<1x128xf32>
    %c2_99 = arith.constant 2 : index
    %c0_100 = arith.constant 0 : index
    %135 = vector.load %arg11[%c2_99, %c0_100] : memref<8x128xf32, #tpu.memory_space<vmem>>, vector<1x128xf32>
    tpu.vector_store %arg11[%c2_99, %c0_100], %134 {strides = array<i32>} : memref<8x128xf32, #tpu.memory_space<vmem>>, vector<1x128xf32>,
    %c27 = arith.constant 27 : index
    %136 = memref.load %arg1[%c27] : memref<64xi32, #tpu.memory_space<smem>>
    %137 = arith.index_cast %136 : i32 to index
    %c0_101 = arith.constant 0 : index
    %138 = vector.load %arg2[%137, %c0_101] : memref<128x128xf32, #tpu.memory_space<vmem>>, vector<1x128xf32>
    %c3_102 = arith.constant 3 : index
    %c0_103 = arith.constant 0 : index
    %139 = vector.load %arg11[%c3_102, %c0_103] : memref<8x128xf32, #tpu.memory_space<vmem>>, vector<1x128xf32>
    tpu.vector_store %arg11[%c3_102, %c0_103], %138 {strides = array<i32>} : memref<8x128xf32, #tpu.memory_space<vmem>>, vector<1x128xf32>,
    %c28 = arith.constant 28 : index
    %140 = memref.load %arg1[%c28] : memref<64xi32, #tpu.memory_space<smem>>
    %141 = arith.index_cast %140 : i32 to index
    %c0_104 = arith.constant 0 : index
    %142 = vector.load %arg2[%141, %c0_104] : memref<128x128xf32, #tpu.memory_space<vmem>>, vector<1x128xf32>
    %c4_105 = arith.constant 4 : index
    %c0_106 = arith.constant 0 : index
    %143 = vector.load %arg11[%c4_105, %c0_106] : memref<8x128xf32, #tpu.memory_space<vmem>>, vector<1x128xf32>
    tpu.vector_store %arg11[%c4_105, %c0_106], %142 {strides = array<i32>} : memref<8x128xf32, #tpu.memory_space<vmem>>, vector<1x128xf32>,
    %c29 = arith.constant 29 : index
    %144 = memref.load %arg1[%c29] : memref<64xi32, #tpu.memory_space<smem>>
    %145 = arith.index_cast %144 : i32 to index
    %c0_107 = arith.constant 0 : index
    %146 = vector.load %arg2[%145, %c0_107] : memref<128x128xf32, #tpu.memory_space<vmem>>, vector<1x128xf32>
    %c5_108 = arith.constant 5 : index
    %c0_109 = arith.constant 0 : index
    %147 = vector.load %arg11[%c5_108, %c0_109] : memref<8x128xf32, #tpu.memory_space<vmem>>, vector<1x128xf32>
    tpu.vector_store %arg11[%c5_108, %c0_109], %146 {strides = array<i32>} : memref<8x128xf32, #tpu.memory_space<vmem>>, vector<1x128xf32>,
    %c30 = arith.constant 30 : index
    %148 = memref.load %arg1[%c30] : memref<64xi32, #tpu.memory_space<smem>>
    %149 = arith.index_cast %148 : i32 to index
    %c0_110 = arith.constant 0 : index
    %150 = vector.load %arg2[%149, %c0_110] : memref<128x128xf32, #tpu.memory_space<vmem>>, vector<1x128xf32>
    %c6_111 = arith.constant 6 : index
    %c0_112 = arith.constant 0 : index
    %151 = vector.load %arg11[%c6_111, %c0_112] : memref<8x128xf32, #tpu.memory_space<vmem>>, vector<1x128xf32>
    tpu.vector_store %arg11[%c6_111, %c0_112], %150 {strides = array<i32>} : memref<8x128xf32, #tpu.memory_space<vmem>>, vector<1x128xf32>,
    %c31 = arith.constant 31 : index
    %152 = memref.load %arg1[%c31] : memref<64xi32, #tpu.memory_space<smem>>
    %153 = arith.index_cast %152 : i32 to index
    %c0_113 = arith.constant 0 : index
    %154 = vector.load %arg2[%153, %c0_113] : memref<128x128xf32, #tpu.memory_space<vmem>>, vector<1x128xf32>
    %c7_114 = arith.constant 7 : index
    %c0_115 = arith.constant 0 : index
    %155 = vector.load %arg11[%c7_114, %c0_115] : memref<8x128xf32, #tpu.memory_space<vmem>>, vector<1x128xf32>
    tpu.vector_store %arg11[%c7_114, %c0_115], %154 {strides = array<i32>} : memref<8x128xf32, #tpu.memory_space<vmem>>, vector<1x128xf32>,
    %c0_116 = arith.constant 0 : index
    %c0_117 = arith.constant 0 : index
    %156 = vector.load %arg11[%c0_116, %c0_117] : memref<8x128xf32, #tpu.memory_space<vmem>>, vector<8x128xf32>
    %157 = vector.broadcast %0 : vector<1x128xf32> to vector<8x128xf32>
    %158 = arith.addf %156, %157 : vector<8x128xf32>
    %cst_118 = arith.constant dense<0.000000e+00> : vector<8x128xf32>
    %159 = tpu.matmul %122, %1, %cst_118 {dimension_numbers = #tpu.dot_dimension_numbers<[1], [0], [0], [1], [0, 0, 1, 1], [], []>} : vector<8x128xbf16>, vector<128x128xbf16>, vector<8x128xf32> -> vector<8x128xf32>
    %160 = arith.addf %158, %159 : vector<8x128xf32>
    %161 = math.tanh %160 : vector<8x128xf32>
    %162 = arith.truncf %161 : vector<8x128xf32> to vector<8x128xbf16>
    %c24_119 = arith.constant 24 : index
    %c0_120 = arith.constant 0 : index
    %163 = vector.load %arg10[%c24_119, %c0_120] : memref<64x128xbf16, #tpu.memory_space<vmem>>, vector<8x128xbf16>
    tpu.vector_store %arg10[%c24_119, %c0_120], %162 {strides = array<i32>} : memref<64x128xbf16, #tpu.memory_space<vmem>>, vector<8x128xbf16>,
    %c32 = arith.constant 32 : index
    %164 = memref.load %arg1[%c32] : memref<64xi32, #tpu.memory_space<smem>>
    %165 = arith.index_cast %164 : i32 to index
    %c0_121 = arith.constant 0 : index
    %166 = vector.load %arg2[%165, %c0_121] : memref<128x128xf32, #tpu.memory_space<vmem>>, vector<1x128xf32>
    %c0_122 = arith.constant 0 : index
    %c0_123 = arith.constant 0 : index
    %167 = vector.load %arg11[%c0_122, %c0_123] : memref<8x128xf32, #tpu.memory_space<vmem>>, vector<1x128xf32>
    tpu.vector_store %arg11[%c0_122, %c0_123], %166 {strides = array<i32>} : memref<8x128xf32, #tpu.memory_space<vmem>>, vector<1x128xf32>,
    %c33 = arith.constant 33 : index
    %168 = memref.load %arg1[%c33] : memref<64xi32, #tpu.memory_space<smem>>
    %169 = arith.index_cast %168 : i32 to index
    %c0_124 = arith.constant 0 : index
    %170 = vector.load %arg2[%169, %c0_124] : memref<128x128xf32, #tpu.memory_space<vmem>>, vector<1x128xf32>
    %c1_125 = arith.constant 1 : index
    %c0_126 = arith.constant 0 : index
    %171 = vector.load %arg11[%c1_125, %c0_126] : memref<8x128xf32, #tpu.memory_space<vmem>>, vector<1x128xf32>
    tpu.vector_store %arg11[%c1_125, %c0_126], %170 {strides = array<i32>} : memref<8x128xf32, #tpu.memory_space<vmem>>, vector<1x128xf32>,
    %c34 = arith.constant 34 : index
    %172 = memref.load %arg1[%c34] : memref<64xi32, #tpu.memory_space<smem>>
    %173 = arith.index_cast %172 : i32 to index
    %c0_127 = arith.constant 0 : index
    %174 = vector.load %arg2[%173, %c0_127] : memref<128x128xf32, #tpu.memory_space<vmem>>, vector<1x128xf32>
    %c2_128 = arith.constant 2 : index
    %c0_129 = arith.constant 0 : index
    %175 = vector.load %arg11[%c2_128, %c0_129] : memref<8x128xf32, #tpu.memory_space<vmem>>, vector<1x128xf32>
    tpu.vector_store %arg11[%c2_128, %c0_129], %174 {strides = array<i32>} : memref<8x128xf32, #tpu.memory_space<vmem>>, vector<1x128xf32>,
    %c35 = arith.constant 35 : index
    %176 = memref.load %arg1[%c35] : memref<64xi32, #tpu.memory_space<smem>>
    %177 = arith.index_cast %176 : i32 to index
    %c0_130 = arith.constant 0 : index
    %178 = vector.load %arg2[%177, %c0_130] : memref<128x128xf32, #tpu.memory_space<vmem>>, vector<1x128xf32>
    %c3_131 = arith.constant 3 : index
    %c0_132 = arith.constant 0 : index
    %179 = vector.load %arg11[%c3_131, %c0_132] : memref<8x128xf32, #tpu.memory_space<vmem>>, vector<1x128xf32>
    tpu.vector_store %arg11[%c3_131, %c0_132], %178 {strides = array<i32>} : memref<8x128xf32, #tpu.memory_space<vmem>>, vector<1x128xf32>,
    %c36 = arith.constant 36 : index
    %180 = memref.load %arg1[%c36] : memref<64xi32, #tpu.memory_space<smem>>
    %181 = arith.index_cast %180 : i32 to index
    %c0_133 = arith.constant 0 : index
    %182 = vector.load %arg2[%181, %c0_133] : memref<128x128xf32, #tpu.memory_space<vmem>>, vector<1x128xf32>
    %c4_134 = arith.constant 4 : index
    %c0_135 = arith.constant 0 : index
    %183 = vector.load %arg11[%c4_134, %c0_135] : memref<8x128xf32, #tpu.memory_space<vmem>>, vector<1x128xf32>
    tpu.vector_store %arg11[%c4_134, %c0_135], %182 {strides = array<i32>} : memref<8x128xf32, #tpu.memory_space<vmem>>, vector<1x128xf32>,
    %c37 = arith.constant 37 : index
    %184 = memref.load %arg1[%c37] : memref<64xi32, #tpu.memory_space<smem>>
    %185 = arith.index_cast %184 : i32 to index
    %c0_136 = arith.constant 0 : index
    %186 = vector.load %arg2[%185, %c0_136] : memref<128x128xf32, #tpu.memory_space<vmem>>, vector<1x128xf32>
    %c5_137 = arith.constant 5 : index
    %c0_138 = arith.constant 0 : index
    %187 = vector.load %arg11[%c5_137, %c0_138] : memref<8x128xf32, #tpu.memory_space<vmem>>, vector<1x128xf32>
    tpu.vector_store %arg11[%c5_137, %c0_138], %186 {strides = array<i32>} : memref<8x128xf32, #tpu.memory_space<vmem>>, vector<1x128xf32>,
    %c38 = arith.constant 38 : index
    %188 = memref.load %arg1[%c38] : memref<64xi32, #tpu.memory_space<smem>>
    %189 = arith.index_cast %188 : i32 to index
    %c0_139 = arith.constant 0 : index
    %190 = vector.load %arg2[%189, %c0_139] : memref<128x128xf32, #tpu.memory_space<vmem>>, vector<1x128xf32>
    %c6_140 = arith.constant 6 : index
    %c0_141 = arith.constant 0 : index
    %191 = vector.load %arg11[%c6_140, %c0_141] : memref<8x128xf32, #tpu.memory_space<vmem>>, vector<1x128xf32>
    tpu.vector_store %arg11[%c6_140, %c0_141], %190 {strides = array<i32>} : memref<8x128xf32, #tpu.memory_space<vmem>>, vector<1x128xf32>,
    %c39 = arith.constant 39 : index
    %192 = memref.load %arg1[%c39] : memref<64xi32, #tpu.memory_space<smem>>
    %193 = arith.index_cast %192 : i32 to index
    %c0_142 = arith.constant 0 : index
    %194 = vector.load %arg2[%193, %c0_142] : memref<128x128xf32, #tpu.memory_space<vmem>>, vector<1x128xf32>
    %c7_143 = arith.constant 7 : index
    %c0_144 = arith.constant 0 : index
    %195 = vector.load %arg11[%c7_143, %c0_144] : memref<8x128xf32, #tpu.memory_space<vmem>>, vector<1x128xf32>
    tpu.vector_store %arg11[%c7_143, %c0_144], %194 {strides = array<i32>} : memref<8x128xf32, #tpu.memory_space<vmem>>, vector<1x128xf32>,
    %c0_145 = arith.constant 0 : index
    %c0_146 = arith.constant 0 : index
    %196 = vector.load %arg11[%c0_145, %c0_146] : memref<8x128xf32, #tpu.memory_space<vmem>>, vector<8x128xf32>
    %197 = vector.broadcast %0 : vector<1x128xf32> to vector<8x128xf32>
    %198 = arith.addf %196, %197 : vector<8x128xf32>
    %cst_147 = arith.constant dense<0.000000e+00> : vector<8x128xf32>
    %199 = tpu.matmul %162, %1, %cst_147 {dimension_numbers = #tpu.dot_dimension_numbers<[1], [0], [0], [1], [0, 0, 1, 1], [], []>} : vector<8x128xbf16>, vector<128x128xbf16>, vector<8x128xf32> -> vector<8x128xf32>
    %200 = arith.addf %198, %199 : vector<8x128xf32>
    %201 = math.tanh %200 : vector<8x128xf32>
    %202 = arith.truncf %201 : vector<8x128xf32> to vector<8x128xbf16>
    %c32_148 = arith.constant 32 : index
    %c0_149 = arith.constant 0 : index
    %203 = vector.load %arg10[%c32_148, %c0_149] : memref<64x128xbf16, #tpu.memory_space<vmem>>, vector<8x128xbf16>
    tpu.vector_store %arg10[%c32_148, %c0_149], %202 {strides = array<i32>} : memref<64x128xbf16, #tpu.memory_space<vmem>>, vector<8x128xbf16>,
    %c40 = arith.constant 40 : index
    %204 = memref.load %arg1[%c40] : memref<64xi32, #tpu.memory_space<smem>>
    %205 = arith.index_cast %204 : i32 to index
    %c0_150 = arith.constant 0 : index
    %206 = vector.load %arg2[%205, %c0_150] : memref<128x128xf32, #tpu.memory_space<vmem>>, vector<1x128xf32>
    %c0_151 = arith.constant 0 : index
    %c0_152 = arith.constant 0 : index
    %207 = vector.load %arg11[%c0_151, %c0_152] : memref<8x128xf32, #tpu.memory_space<vmem>>, vector<1x128xf32>
    tpu.vector_store %arg11[%c0_151, %c0_152], %206 {strides = array<i32>} : memref<8x128xf32, #tpu.memory_space<vmem>>, vector<1x128xf32>,
    %c41 = arith.constant 41 : index
    %208 = memref.load %arg1[%c41] : memref<64xi32, #tpu.memory_space<smem>>
    %209 = arith.index_cast %208 : i32 to index
    %c0_153 = arith.constant 0 : index
    %210 = vector.load %arg2[%209, %c0_153] : memref<128x128xf32, #tpu.memory_space<vmem>>, vector<1x128xf32>
    %c1_154 = arith.constant 1 : index
    %c0_155 = arith.constant 0 : index
    %211 = vector.load %arg11[%c1_154, %c0_155] : memref<8x128xf32, #tpu.memory_space<vmem>>, vector<1x128xf32>
    tpu.vector_store %arg11[%c1_154, %c0_155], %210 {strides = array<i32>} : memref<8x128xf32, #tpu.memory_space<vmem>>, vector<1x128xf32>,
    %c42 = arith.constant 42 : index
    %212 = memref.load %arg1[%c42] : memref<64xi32, #tpu.memory_space<smem>>
    %213 = arith.index_cast %212 : i32 to index
    %c0_156 = arith.constant 0 : index
    %214 = vector.load %arg2[%213, %c0_156] : memref<128x128xf32, #tpu.memory_space<vmem>>, vector<1x128xf32>
    %c2_157 = arith.constant 2 : index
    %c0_158 = arith.constant 0 : index
    %215 = vector.load %arg11[%c2_157, %c0_158] : memref<8x128xf32, #tpu.memory_space<vmem>>, vector<1x128xf32>
    tpu.vector_store %arg11[%c2_157, %c0_158], %214 {strides = array<i32>} : memref<8x128xf32, #tpu.memory_space<vmem>>, vector<1x128xf32>,
    %c43 = arith.constant 43 : index
    %216 = memref.load %arg1[%c43] : memref<64xi32, #tpu.memory_space<smem>>
    %217 = arith.index_cast %216 : i32 to index
    %c0_159 = arith.constant 0 : index
    %218 = vector.load %arg2[%217, %c0_159] : memref<128x128xf32, #tpu.memory_space<vmem>>, vector<1x128xf32>
    %c3_160 = arith.constant 3 : index
    %c0_161 = arith.constant 0 : index
    %219 = vector.load %arg11[%c3_160, %c0_161] : memref<8x128xf32, #tpu.memory_space<vmem>>, vector<1x128xf32>
    tpu.vector_store %arg11[%c3_160, %c0_161], %218 {strides = array<i32>} : memref<8x128xf32, #tpu.memory_space<vmem>>, vector<1x128xf32>,
    %c44 = arith.constant 44 : index
    %220 = memref.load %arg1[%c44] : memref<64xi32, #tpu.memory_space<smem>>
    %221 = arith.index_cast %220 : i32 to index
    %c0_162 = arith.constant 0 : index
    %222 = vector.load %arg2[%221, %c0_162] : memref<128x128xf32, #tpu.memory_space<vmem>>, vector<1x128xf32>
    %c4_163 = arith.constant 4 : index
    %c0_164 = arith.constant 0 : index
    %223 = vector.load %arg11[%c4_163, %c0_164] : memref<8x128xf32, #tpu.memory_space<vmem>>, vector<1x128xf32>
    tpu.vector_store %arg11[%c4_163, %c0_164], %222 {strides = array<i32>} : memref<8x128xf32, #tpu.memory_space<vmem>>, vector<1x128xf32>,
    %c45 = arith.constant 45 : index
    %224 = memref.load %arg1[%c45] : memref<64xi32, #tpu.memory_space<smem>>
    %225 = arith.index_cast %224 : i32 to index
    %c0_165 = arith.constant 0 : index
    %226 = vector.load %arg2[%225, %c0_165] : memref<128x128xf32, #tpu.memory_space<vmem>>, vector<1x128xf32>
    %c5_166 = arith.constant 5 : index
    %c0_167 = arith.constant 0 : index
    %227 = vector.load %arg11[%c5_166, %c0_167] : memref<8x128xf32, #tpu.memory_space<vmem>>, vector<1x128xf32>
    tpu.vector_store %arg11[%c5_166, %c0_167], %226 {strides = array<i32>} : memref<8x128xf32, #tpu.memory_space<vmem>>, vector<1x128xf32>,
    %c46 = arith.constant 46 : index
    %228 = memref.load %arg1[%c46] : memref<64xi32, #tpu.memory_space<smem>>
    %229 = arith.index_cast %228 : i32 to index
    %c0_168 = arith.constant 0 : index
    %230 = vector.load %arg2[%229, %c0_168] : memref<128x128xf32, #tpu.memory_space<vmem>>, vector<1x128xf32>
    %c6_169 = arith.constant 6 : index
    %c0_170 = arith.constant 0 : index
    %231 = vector.load %arg11[%c6_169, %c0_170] : memref<8x128xf32, #tpu.memory_space<vmem>>, vector<1x128xf32>
    tpu.vector_store %arg11[%c6_169, %c0_170], %230 {strides = array<i32>} : memref<8x128xf32, #tpu.memory_space<vmem>>, vector<1x128xf32>,
    %c47 = arith.constant 47 : index
    %232 = memref.load %arg1[%c47] : memref<64xi32, #tpu.memory_space<smem>>
    %233 = arith.index_cast %232 : i32 to index
    %c0_171 = arith.constant 0 : index
    %234 = vector.load %arg2[%233, %c0_171] : memref<128x128xf32, #tpu.memory_space<vmem>>, vector<1x128xf32>
    %c7_172 = arith.constant 7 : index
    %c0_173 = arith.constant 0 : index
    %235 = vector.load %arg11[%c7_172, %c0_173] : memref<8x128xf32, #tpu.memory_space<vmem>>, vector<1x128xf32>
    tpu.vector_store %arg11[%c7_172, %c0_173], %234 {strides = array<i32>} : memref<8x128xf32, #tpu.memory_space<vmem>>, vector<1x128xf32>,
    %c0_174 = arith.constant 0 : index
    %c0_175 = arith.constant 0 : index
    %236 = vector.load %arg11[%c0_174, %c0_175] : memref<8x128xf32, #tpu.memory_space<vmem>>, vector<8x128xf32>
    %237 = vector.broadcast %0 : vector<1x128xf32> to vector<8x128xf32>
    %238 = arith.addf %236, %237 : vector<8x128xf32>
    %cst_176 = arith.constant dense<0.000000e+00> : vector<8x128xf32>
    %239 = tpu.matmul %202, %1, %cst_176 {dimension_numbers = #tpu.dot_dimension_numbers<[1], [0], [0], [1], [0, 0, 1, 1], [], []>} : vector<8x128xbf16>, vector<128x128xbf16>, vector<8x128xf32> -> vector<8x128xf32>
    %240 = arith.addf %238, %239 : vector<8x128xf32>
    %241 = math.tanh %240 : vector<8x128xf32>
    %242 = arith.truncf %241 : vector<8x128xf32> to vector<8x128xbf16>
    %c40_177 = arith.constant 40 : index
    %c0_178 = arith.constant 0 : index
    %243 = vector.load %arg10[%c40_177, %c0_178] : memref<64x128xbf16, #tpu.memory_space<vmem>>, vector<8x128xbf16>
    tpu.vector_store %arg10[%c40_177, %c0_178], %242 {strides = array<i32>} : memref<64x128xbf16, #tpu.memory_space<vmem>>, vector<8x128xbf16>,
    %c48 = arith.constant 48 : index
    %244 = memref.load %arg1[%c48] : memref<64xi32, #tpu.memory_space<smem>>
    %245 = arith.index_cast %244 : i32 to index
    %c0_179 = arith.constant 0 : index
    %246 = vector.load %arg2[%245, %c0_179] : memref<128x128xf32, #tpu.memory_space<vmem>>, vector<1x128xf32>
    %c0_180 = arith.constant 0 : index
    %c0_181 = arith.constant 0 : index
    %247 = vector.load %arg11[%c0_180, %c0_181] : memref<8x128xf32, #tpu.memory_space<vmem>>, vector<1x128xf32>
    tpu.vector_store %arg11[%c0_180, %c0_181], %246 {strides = array<i32>} : memref<8x128xf32, #tpu.memory_space<vmem>>, vector<1x128xf32>,
    %c49 = arith.constant 49 : index
    %248 = memref.load %arg1[%c49] : memref<64xi32, #tpu.memory_space<smem>>
    %249 = arith.index_cast %248 : i32 to index
    %c0_182 = arith.constant 0 : index
    %250 = vector.load %arg2[%249, %c0_182] : memref<128x128xf32, #tpu.memory_space<vmem>>, vector<1x128xf32>
    %c1_183 = arith.constant 1 : index
    %c0_184 = arith.constant 0 : index
    %251 = vector.load %arg11[%c1_183, %c0_184] : memref<8x128xf32, #tpu.memory_space<vmem>>, vector<1x128xf32>
    tpu.vector_store %arg11[%c1_183, %c0_184], %250 {strides = array<i32>} : memref<8x128xf32, #tpu.memory_space<vmem>>, vector<1x128xf32>,
    %c50 = arith.constant 50 : index
    %252 = memref.load %arg1[%c50] : memref<64xi32, #tpu.memory_space<smem>>
    %253 = arith.index_cast %252 : i32 to index
    %c0_185 = arith.constant 0 : index
    %254 = vector.load %arg2[%253, %c0_185] : memref<128x128xf32, #tpu.memory_space<vmem>>, vector<1x128xf32>
    %c2_186 = arith.constant 2 : index
    %c0_187 = arith.constant 0 : index
    %255 = vector.load %arg11[%c2_186, %c0_187] : memref<8x128xf32, #tpu.memory_space<vmem>>, vector<1x128xf32>
    tpu.vector_store %arg11[%c2_186, %c0_187], %254 {strides = array<i32>} : memref<8x128xf32, #tpu.memory_space<vmem>>, vector<1x128xf32>,
    %c51 = arith.constant 51 : index
    %256 = memref.load %arg1[%c51] : memref<64xi32, #tpu.memory_space<smem>>
    %257 = arith.index_cast %256 : i32 to index
    %c0_188 = arith.constant 0 : index
    %258 = vector.load %arg2[%257, %c0_188] : memref<128x128xf32, #tpu.memory_space<vmem>>, vector<1x128xf32>
    %c3_189 = arith.constant 3 : index
    %c0_190 = arith.constant 0 : index
    %259 = vector.load %arg11[%c3_189, %c0_190] : memref<8x128xf32, #tpu.memory_space<vmem>>, vector<1x128xf32>
    tpu.vector_store %arg11[%c3_189, %c0_190], %258 {strides = array<i32>} : memref<8x128xf32, #tpu.memory_space<vmem>>, vector<1x128xf32>,
    %c52 = arith.constant 52 : index
    %260 = memref.load %arg1[%c52] : memref<64xi32, #tpu.memory_space<smem>>
    %261 = arith.index_cast %260 : i32 to index
    %c0_191 = arith.constant 0 : index
    %262 = vector.load %arg2[%261, %c0_191] : memref<128x128xf32, #tpu.memory_space<vmem>>, vector<1x128xf32>
    %c4_192 = arith.constant 4 : index
    %c0_193 = arith.constant 0 : index
    %263 = vector.load %arg11[%c4_192, %c0_193] : memref<8x128xf32, #tpu.memory_space<vmem>>, vector<1x128xf32>
    tpu.vector_store %arg11[%c4_192, %c0_193], %262 {strides = array<i32>} : memref<8x128xf32, #tpu.memory_space<vmem>>, vector<1x128xf32>,
    %c53 = arith.constant 53 : index
    %264 = memref.load %arg1[%c53] : memref<64xi32, #tpu.memory_space<smem>>
    %265 = arith.index_cast %264 : i32 to index
    %c0_194 = arith.constant 0 : index
    %266 = vector.load %arg2[%265, %c0_194] : memref<128x128xf32, #tpu.memory_space<vmem>>, vector<1x128xf32>
    %c5_195 = arith.constant 5 : index
    %c0_196 = arith.constant 0 : index
    %267 = vector.load %arg11[%c5_195, %c0_196] : memref<8x128xf32, #tpu.memory_space<vmem>>, vector<1x128xf32>
    tpu.vector_store %arg11[%c5_195, %c0_196], %266 {strides = array<i32>} : memref<8x128xf32, #tpu.memory_space<vmem>>, vector<1x128xf32>,
    %c54 = arith.constant 54 : index
    %268 = memref.load %arg1[%c54] : memref<64xi32, #tpu.memory_space<smem>>
    %269 = arith.index_cast %268 : i32 to index
    %c0_197 = arith.constant 0 : index
    %270 = vector.load %arg2[%269, %c0_197] : memref<128x128xf32, #tpu.memory_space<vmem>>, vector<1x128xf32>
    %c6_198 = arith.constant 6 : index
    %c0_199 = arith.constant 0 : index
    %271 = vector.load %arg11[%c6_198, %c0_199] : memref<8x128xf32, #tpu.memory_space<vmem>>, vector<1x128xf32>
    tpu.vector_store %arg11[%c6_198, %c0_199], %270 {strides = array<i32>} : memref<8x128xf32, #tpu.memory_space<vmem>>, vector<1x128xf32>,
    %c55 = arith.constant 55 : index
    %272 = memref.load %arg1[%c55] : memref<64xi32, #tpu.memory_space<smem>>
    %273 = arith.index_cast %272 : i32 to index
    %c0_200 = arith.constant 0 : index
    %274 = vector.load %arg2[%273, %c0_200] : memref<128x128xf32, #tpu.memory_space<vmem>>, vector<1x128xf32>
    %c7_201 = arith.constant 7 : index
    %c0_202 = arith.constant 0 : index
    %275 = vector.load %arg11[%c7_201, %c0_202] : memref<8x128xf32, #tpu.memory_space<vmem>>, vector<1x128xf32>
    tpu.vector_store %arg11[%c7_201, %c0_202], %274 {strides = array<i32>} : memref<8x128xf32, #tpu.memory_space<vmem>>, vector<1x128xf32>,
    %c0_203 = arith.constant 0 : index
    %c0_204 = arith.constant 0 : index
    %276 = vector.load %arg11[%c0_203, %c0_204] : memref<8x128xf32, #tpu.memory_space<vmem>>, vector<8x128xf32>
    %277 = vector.broadcast %0 : vector<1x128xf32> to vector<8x128xf32>
    %278 = arith.addf %276, %277 : vector<8x128xf32>
    %cst_205 = arith.constant dense<0.000000e+00> : vector<8x128xf32>
    %279 = tpu.matmul %242, %1, %cst_205 {dimension_numbers = #tpu.dot_dimension_numbers<[1], [0], [0], [1], [0, 0, 1, 1], [], []>} : vector<8x128xbf16>, vector<128x128xbf16>, vector<8x128xf32> -> vector<8x128xf32>
    %280 = arith.addf %278, %279 : vector<8x128xf32>
    %281 = math.tanh %280 : vector<8x128xf32>
    %282 = arith.truncf %281 : vector<8x128xf32> to vector<8x128xbf16>
    %c48_206 = arith.constant 48 : index
    %c0_207 = arith.constant 0 : index
    %283 = vector.load %arg10[%c48_206, %c0_207] : memref<64x128xbf16, #tpu.memory_space<vmem>>, vector<8x128xbf16>
    tpu.vector_store %arg10[%c48_206, %c0_207], %282 {strides = array<i32>} : memref<64x128xbf16, #tpu.memory_space<vmem>>, vector<8x128xbf16>,
    %c56 = arith.constant 56 : index
    %284 = memref.load %arg1[%c56] : memref<64xi32, #tpu.memory_space<smem>>
    %285 = arith.index_cast %284 : i32 to index
    %c0_208 = arith.constant 0 : index
    %286 = vector.load %arg2[%285, %c0_208] : memref<128x128xf32, #tpu.memory_space<vmem>>, vector<1x128xf32>
    %c0_209 = arith.constant 0 : index
    %c0_210 = arith.constant 0 : index
    %287 = vector.load %arg11[%c0_209, %c0_210] : memref<8x128xf32, #tpu.memory_space<vmem>>, vector<1x128xf32>
    tpu.vector_store %arg11[%c0_209, %c0_210], %286 {strides = array<i32>} : memref<8x128xf32, #tpu.memory_space<vmem>>, vector<1x128xf32>,
    %c57 = arith.constant 57 : index
    %288 = memref.load %arg1[%c57] : memref<64xi32, #tpu.memory_space<smem>>
    %289 = arith.index_cast %288 : i32 to index
    %c0_211 = arith.constant 0 : index
    %290 = vector.load %arg2[%289, %c0_211] : memref<128x128xf32, #tpu.memory_space<vmem>>, vector<1x128xf32>
    %c1_212 = arith.constant 1 : index
    %c0_213 = arith.constant 0 : index
    %291 = vector.load %arg11[%c1_212, %c0_213] : memref<8x128xf32, #tpu.memory_space<vmem>>, vector<1x128xf32>
    tpu.vector_store %arg11[%c1_212, %c0_213], %290 {strides = array<i32>} : memref<8x128xf32, #tpu.memory_space<vmem>>, vector<1x128xf32>,
    %c58 = arith.constant 58 : index
    %292 = memref.load %arg1[%c58] : memref<64xi32, #tpu.memory_space<smem>>
    %293 = arith.index_cast %292 : i32 to index
    %c0_214 = arith.constant 0 : index
    %294 = vector.load %arg2[%293, %c0_214] : memref<128x128xf32, #tpu.memory_space<vmem>>, vector<1x128xf32>
    %c2_215 = arith.constant 2 : index
    %c0_216 = arith.constant 0 : index
    %295 = vector.load %arg11[%c2_215, %c0_216] : memref<8x128xf32, #tpu.memory_space<vmem>>, vector<1x128xf32>
    tpu.vector_store %arg11[%c2_215, %c0_216], %294 {strides = array<i32>} : memref<8x128xf32, #tpu.memory_space<vmem>>, vector<1x128xf32>,
    %c59 = arith.constant 59 : index
    %296 = memref.load %arg1[%c59] : memref<64xi32, #tpu.memory_space<smem>>
    %297 = arith.index_cast %296 : i32 to index
    %c0_217 = arith.constant 0 : index
    %298 = vector.load %arg2[%297, %c0_217] : memref<128x128xf32, #tpu.memory_space<vmem>>, vector<1x128xf32>
    %c3_218 = arith.constant 3 : index
    %c0_219 = arith.constant 0 : index
    %299 = vector.load %arg11[%c3_218, %c0_219] : memref<8x128xf32, #tpu.memory_space<vmem>>, vector<1x128xf32>
    tpu.vector_store %arg11[%c3_218, %c0_219], %298 {strides = array<i32>} : memref<8x128xf32, #tpu.memory_space<vmem>>, vector<1x128xf32>,
    %c60 = arith.constant 60 : index
    %300 = memref.load %arg1[%c60] : memref<64xi32, #tpu.memory_space<smem>>
    %301 = arith.index_cast %300 : i32 to index
    %c0_220 = arith.constant 0 : index
    %302 = vector.load %arg2[%301, %c0_220] : memref<128x128xf32, #tpu.memory_space<vmem>>, vector<1x128xf32>
    %c4_221 = arith.constant 4 : index
    %c0_222 = arith.constant 0 : index
    %303 = vector.load %arg11[%c4_221, %c0_222] : memref<8x128xf32, #tpu.memory_space<vmem>>, vector<1x128xf32>
    tpu.vector_store %arg11[%c4_221, %c0_222], %302 {strides = array<i32>} : memref<8x128xf32, #tpu.memory_space<vmem>>, vector<1x128xf32>,
    %c61 = arith.constant 61 : index
    %304 = memref.load %arg1[%c61] : memref<64xi32, #tpu.memory_space<smem>>
    %305 = arith.index_cast %304 : i32 to index
    %c0_223 = arith.constant 0 : index
    %306 = vector.load %arg2[%305, %c0_223] : memref<128x128xf32, #tpu.memory_space<vmem>>, vector<1x128xf32>
    %c5_224 = arith.constant 5 : index
    %c0_225 = arith.constant 0 : index
    %307 = vector.load %arg11[%c5_224, %c0_225] : memref<8x128xf32, #tpu.memory_space<vmem>>, vector<1x128xf32>
    tpu.vector_store %arg11[%c5_224, %c0_225], %306 {strides = array<i32>} : memref<8x128xf32, #tpu.memory_space<vmem>>, vector<1x128xf32>,
    %c62 = arith.constant 62 : index
    %308 = memref.load %arg1[%c62] : memref<64xi32, #tpu.memory_space<smem>>
    %309 = arith.index_cast %308 : i32 to index
    %c0_226 = arith.constant 0 : index
    %310 = vector.load %arg2[%309, %c0_226] : memref<128x128xf32, #tpu.memory_space<vmem>>, vector<1x128xf32>
    %c6_227 = arith.constant 6 : index
    %c0_228 = arith.constant 0 : index
    %311 = vector.load %arg11[%c6_227, %c0_228] : memref<8x128xf32, #tpu.memory_space<vmem>>, vector<1x128xf32>
    tpu.vector_store %arg11[%c6_227, %c0_228], %310 {strides = array<i32>} : memref<8x128xf32, #tpu.memory_space<vmem>>, vector<1x128xf32>,
    %c63 = arith.constant 63 : index
    %312 = memref.load %arg1[%c63] : memref<64xi32, #tpu.memory_space<smem>>
    %313 = arith.index_cast %312 : i32 to index
    %c0_229 = arith.constant 0 : index
    %314 = vector.load %arg2[%313, %c0_229] : memref<128x128xf32, #tpu.memory_space<vmem>>, vector<1x128xf32>
    %c7_230 = arith.constant 7 : index
    %c0_231 = arith.constant 0 : index
    %315 = vector.load %arg11[%c7_230, %c0_231] : memref<8x128xf32, #tpu.memory_space<vmem>>, vector<1x128xf32>
    tpu.vector_store %arg11[%c7_230, %c0_231], %314 {strides = array<i32>} : memref<8x128xf32, #tpu.memory_space<vmem>>, vector<1x128xf32>,
    %c0_232 = arith.constant 0 : index
    %c0_233 = arith.constant 0 : index
    %316 = vector.load %arg11[%c0_232, %c0_233] : memref<8x128xf32, #tpu.memory_space<vmem>>, vector<8x128xf32>
    %317 = vector.broadcast %0 : vector<1x128xf32> to vector<8x128xf32>
    %318 = arith.addf %316, %317 : vector<8x128xf32>
    %cst_234 = arith.constant dense<0.000000e+00> : vector<8x128xf32>
    %319 = tpu.matmul %282, %1, %cst_234 {dimension_numbers = #tpu.dot_dimension_numbers<[1], [0], [0], [1], [0, 0, 1, 1], [], []>} : vector<8x128xbf16>, vector<128x128xbf16>, vector<8x128xf32> -> vector<8x128xf32>
    %320 = arith.addf %318, %319 : vector<8x128xf32>
    %321 = math.tanh %320 : vector<8x128xf32>
    %322 = arith.truncf %321 : vector<8x128xf32> to vector<8x128xbf16>
    %c56_235 = arith.constant 56 : index
    %c0_236 = arith.constant 0 : index
    %323 = vector.load %arg10[%c56_235, %c0_236] : memref<64x128xbf16, #tpu.memory_space<vmem>>, vector<8x128xbf16>
    tpu.vector_store %arg10[%c56_235, %c0_236], %322 {strides = array<i32>} : memref<64x128xbf16, #tpu.memory_space<vmem>>, vector<8x128xbf16>,
    %c0_237 = arith.constant 0 : index
    %c0_238 = arith.constant 0 : index
    %324 = vector.load %arg9[%c0_237, %c0_238] : memref<8x128xf32, #tpu.memory_space<vmem>>, vector<8x128xf32>
    tpu.vector_store %arg9[%c0_237, %c0_238], %321 {strides = array<i32>} : memref<8x128xf32, #tpu.memory_space<vmem>>, vector<8x128xf32>,
    %c0_239 = arith.constant 0 : index
    %c0_240 = arith.constant 0 : index
    %325 = vector.load %arg10[%c0_239, %c0_240] : memref<64x128xbf16, #tpu.memory_space<vmem>>, vector<64x128xbf16>
    %c0_241 = arith.constant 0 : index
    %c0_242 = arith.constant 0 : index
    %326 = vector.load %arg6[%c0_241, %c0_242] : memref<128x128xbf16, #tpu.memory_space<vmem>>, vector<128x128xbf16>
    %cst_243 = arith.constant dense<0.000000e+00> : vector<64x128xf32>
    %327 = tpu.matmul %325, %326, %cst_243 {dimension_numbers = #tpu.dot_dimension_numbers<[1], [0], [0], [1], [0, 0, 1, 1], [], []>} : vector<64x128xbf16>, vector<128x128xbf16>, vector<64x128xf32> -> vector<64x128xf32>
    %c0_244 = arith.constant 0 : index
    %c0_245 = arith.constant 0 : index
    %328 = vector.load %arg7[%c0_244, %c0_245] : memref<1x128xf32, #tpu.memory_space<vmem>>, vector<1x128xf32>
    %329 = vector.broadcast %328 : vector<1x128xf32> to vector<64x128xf32>
    %330 = arith.addf %327, %329 : vector<64x128xf32>
    %c0_246 = arith.constant 0 : index
    %c0_247 = arith.constant 0 : index
    %331 = vector.load %arg8[%c0_246, %c0_247] : memref<64x128xf32, #tpu.memory_space<vmem>>, vector<64x128xf32>
    tpu.vector_store %arg8[%c0_246, %c0_247], %330 {strides = array<i32>} : memref<64x128xf32, #tpu.memory_space<vmem>>, vector<64x128xf32>,
    return
  }
  func.func @transform_0(%arg0: i32, %arg1: memref<64xi32, #tpu.memory_space<smem>>) -> (i32, i32) {
    %c0_i32 = arith.constant 0 : i32
    %c0_i32_0 = arith.constant 0 : i32
    %c0_i32_1 = arith.constant 0 : i32
    return %c0_i32, %c0_i32_0 : i32, i32
  }
  func.func @transform_1(%arg0: i32, %arg1: memref<64xi32, #tpu.memory_space<smem>>) -> (i32, i32) {
    %c0_i32 = arith.constant 0 : i32
    %c0_i32_0 = arith.constant 0 : i32
    %c0_i32_1 = arith.constant 0 : i32
    return %c0_i32, %c0_i32_0 : i32, i32
  }
  func.func @transform_2(%arg0: i32, %arg1: memref<64xi32, #tpu.memory_space<smem>>) -> (i32, i32) {
    %c0_i32 = arith.constant 0 : i32
    %c0_i32_0 = arith.constant 0 : i32
    %c0_i32_1 = arith.constant 0 : i32
    return %c0_i32, %c0_i32_0 : i32, i32
  }
  func.func @transform_3(%arg0: i32, %arg1: memref<64xi32, #tpu.memory_space<smem>>) -> (i32, i32) {
    %c0_i32 = arith.constant 0 : i32
    %c0_i32_0 = arith.constant 0 : i32
    %c0_i32_1 = arith.constant 0 : i32
    return %c0_i32, %c0_i32_0 : i32, i32
  }
  func.func @transform_4(%arg0: i32, %arg1: memref<64xi32, #tpu.memory_space<smem>>) -> (i32, i32) {
    %c0_i32 = arith.constant 0 : i32
    %c0_i32_0 = arith.constant 0 : i32
    %c0_i32_1 = arith.constant 0 : i32
    return %c0_i32, %c0_i32_0 : i32, i32
  }
  func.func @transform_5(%arg0: i32, %arg1: memref<64xi32, #tpu.memory_space<smem>>) -> (i32, i32) {
    %c0_i32 = arith.constant 0 : i32
    %c0_i32_0 = arith.constant 0 : i32
    %c0_i32_1 = arith.constant 0 : i32
    return %c0_i32, %c0_i32_0 : i32, i32
  }
  func.func @transform_6(%arg0: i32, %arg1: memref<64xi32, #tpu.memory_space<smem>>) -> (i32, i32) {
    %c0_i32 = arith.constant 0 : i32
    %c0_i32_0 = arith.constant 0 : i32
    %c0_i32_1 = arith.constant 0 : i32
    return %c0_i32, %c0_i32_0 : i32, i32
  }
  func.func @transform_7(%arg0: i32, %arg1: memref<64xi32, #tpu.memory_space<smem>>) -> (i32, i32) {
    %c0_i32 = arith.constant 0 : i32
    %c0_i32_0 = arith.constant 0 : i32
    %c0_i32_1 = arith.constant 0 : i32
    return %c0_i32, %c0_i32_0 : i32, i32
  }
}

</mosaic_0001>

<llo_original>
// kernel: tpu_custom_call.1
$region0: #{tpu_custom_call.1}
  #allocation0 [shape = 'u32[]', space=smem, size = 0x4, offset = 0x4, fixed_abs, tag = 'smem constant byte address 0x4 - core index']
  #allocation1 [shape = 'u32[144,128]{1,0:T(1,128)}', space=vmem, size = 0x12000, scoped, tag = 'internal scratch']
  #allocation2 [shape = 'bf16[64,128]{1,0:T(8,128)(2,1)}', space=vmem, size = 0x4000, scoped, tag = 'scratch operand']
  #allocation3 [shape = 'f32[8,128]{1,0:T(8,128)}', space=vmem, size = 0x1000, scoped, tag = 'scratch operand']
  #allocation4 [shape = 's32[1]{0}', space=sflag, size = 0x4, scoped, tag = 'scoped memory for tpu_custom_call.1']
  #allocation5 [shape = 'u8[512]{0}', space=smem, size = 0x200, scoped, tag = 'prefetched SMEM operand 0']
  %s0 = inlined_call_operand.hbm [shape: s32[64], index: 0, kind: input, shape index: {}]
  %s1 = inlined_call_operand.hbm [shape: f32[128,128], index: 1, kind: input, shape index: {}]
  %s2 = inlined_call_operand.vmem [shape: f32[1,128], index: 2, kind: input, shape index: {}]
  %s3 = inlined_call_operand.hbm [shape: bf16[128,128], index: 3, kind: input, shape index: {}]
  %s4 = inlined_call_operand.hbm [shape: f32[8,128], index: 4, kind: input, shape index: {}]
  %s5 = inlined_call_operand.hbm [shape: bf16[128,128], index: 5, kind: input, shape index: {}]
  %s6 = inlined_call_operand.vmem [shape: f32[1,128], index: 6, kind: input, shape index: {}]
  %s7 = inlined_call_operand.hbm [shape: f32[64,128], index: 7, kind: output, shape index: {0}]
  %s8 = inlined_call_operand.hbm [shape: f32[8,128], index: 8, kind: output, shape index: {1}]
  %9 = xla_tuple %s7, %s8
  %s10 = sld [smem:[#allocation0]]
  $region58: #{tpu_custom_call.1} parent=0
    _
  %s12 = ssub.s32 1, %s10
  %s13 = scalar_select 0, %s12, %s10
  %15 = dma.hbm_to_smem %s0, 16, [#allocation5], [#allocation4]
  %16 = dma.done [#allocation4], 16
  %17 = sfence
  $region1: #{tpu_custom_call.1} parent=0
    #allocation6 [shape = 'u8[65536]{0}', space=vmem, size = 0x10000, scoped, tag = 'input window, operand 1, single buffered']
    #allocation7 [shape = 's32[1]{0}', space=sflag, size = 0x4, scoped, tag = 'scoped memory for tpu_custom_call.1']
    #allocation8 [shape = 's32[1]{0}', space=sflag, size = 0x4, scoped, tag = 'scoped memory for tpu_custom_call.1']
    #allocation9 [shape = 'u8[32768]{0}', space=vmem, size = 0x8000, scoped, tag = 'input window, operand 3, single buffered']
    #allocation10 [shape = 's32[1]{0}', space=sflag, size = 0x4, scoped, tag = 'scoped memory for tpu_custom_call.1']
    #allocation11 [shape = 'u8[4096]{0}', space=vmem, size = 0x1000, scoped, tag = 'input window, operand 4, single buffered']
    #allocation12 [shape = 'u8[32768]{0}', space=vmem, size = 0x8000, scoped, tag = 'input window, operand 5, single buffered']
    #allocation13 [shape = 's32[1]{0}', space=sflag, size = 0x4, scoped, tag = 'scoped memory for tpu_custom_call.1']
    #allocation14 [shape = 'u8[32768]{0}', space=vmem, size = 0x8000, scoped, tag = 'output window, operand 0, single buffered']
    #allocation15 [shape = 'u8[4096]{0}', space=vmem, size = 0x1000, scoped, tag = 'output window, operand 1, single buffered']
    #allocation16 [shape = 's32[1]{0}', space=sflag, size = 0x4, scoped, tag = 'scoped memory for tpu_custom_call.1']
    %18 = vsyncpa [#allocation7], 0
    %19 = vsyncpa [#allocation10], 0
    %20 = vsyncpa [#allocation13], 0
    %21 = vsyncpa [#allocation8], 0
    %22 = vsyncpa [#allocation16], 0
    // Predicated region
    $region2: #{tpu_custom_call.1} parent=1 // pred_check
      _
    $region3: #{tpu_custom_call.1} parent=1 // pred_check_branch
      %24 = sbr.rel (0) target = $region5
    $region4: #{tpu_custom_call.1} parent=1 // pred_region
      %s26 = ssub.s32 2048, 2048
      %27 = vsyncadd [#allocation7], %s26
      %s28 = sshll.u32 [#allocation6], 4
      %s29 = int_to_ptr.vmem [resolvable:$true] %s28
      %34 = dma.hbm_to_vmem [thread:$0]  %s1, 2048, %s29, [#allocation7], 128, 128, 8
    $region5: #{tpu_custom_call.1} parent=1 // pred_fallthru
      _
    // Predicated region
    $region6: #{tpu_custom_call.1} parent=1 // pred_check
      _
    $region7: #{tpu_custom_call.1} parent=1 // pred_check_branch
      %36 = sbr.rel (0) target = $region9
    $region8: #{tpu_custom_call.1} parent=1 // pred_region
      _
    $region9: #{tpu_custom_call.1} parent=1 // pred_fallthru
      _
    // Predicated region
    $region10: #{tpu_custom_call.1} parent=1 // pred_check
      _
    $region11: #{tpu_custom_call.1} parent=1 // pred_check_branch
      %38 = sbr.rel (0) target = $region13
    $region12: #{tpu_custom_call.1} parent=1 // pred_region
      %s40 = ssub.s32 1024, 1024
      %41 = vsyncadd [#allocation10], %s40
      %s42 = sshll.u32 [#allocation9], 4
      %s43 = int_to_ptr.vmem [resolvable:$true] %s42
      %48 = dma.hbm_to_vmem [thread:$0]  %s3, 1024, %s43, [#allocation10], 64, 64, 4
    $region13: #{tpu_custom_call.1} parent=1 // pred_fallthru
      _
    // Predicated region
    $region14: #{tpu_custom_call.1} parent=1 // pred_check
      _
    $region15: #{tpu_custom_call.1} parent=1 // pred_check_branch
      %50 = sbr.rel (0) target = $region17
    $region16: #{tpu_custom_call.1} parent=1 // pred_region
      %s52 = ssub.s32 128, 128
      %53 = vsyncadd [#allocation10], %s52
      %s55 = sshll.u32 [#allocation11], 4
      %s56 = int_to_ptr.vmem [resolvable:$true] %s55
      %58 = dma.hbm_to_vmem [thread:$0]  %s4, 128, %s56, [#allocation10]
    $region17: #{tpu_custom_call.1} parent=1 // pred_fallthru
      _
    // Predicated region
    $region18: #{tpu_custom_call.1} parent=1 // pred_check
      _
    $region19: #{tpu_custom_call.1} parent=1 // pred_check_branch
      %60 = sbr.rel (0) target = $region21
    $region20: #{tpu_custom_call.1} parent=1 // pred_region
      %s62 = ssub.s32 1024, 1024
      %63 = vsyncadd [#allocation13], %s62
      %s64 = sshll.u32 [#allocation12], 4
      %s65 = int_to_ptr.vmem [resolvable:$true] %s64
      %70 = dma.hbm_to_vmem [thread:$0]  %s5, 1024, %s65, [#allocation13], 64, 64, 4
    $region21: #{tpu_custom_call.1} parent=1 // pred_fallthru
      _
    // Predicated region
    $region22: #{tpu_custom_call.1} parent=1 // pred_check
      _
    $region23: #{tpu_custom_call.1} parent=1 // pred_check_branch
      %72 = sbr.rel (0) target = $region25
    $region24: #{tpu_custom_call.1} parent=1 // pred_region
      _
    $region25: #{tpu_custom_call.1} parent=1 // pred_fallthru
      _
    // Predicated region
    $region26: #{tpu_custom_call.1} parent=1 // pred_check
      _
    $region27: #{tpu_custom_call.1} parent=1 // pred_check_branch
      %74 = sbr.rel (0) target = $region29
    $region28: #{tpu_custom_call.1} parent=1 // pred_region
      %75 = dma.done [#allocation7], 2048
    $region29: #{tpu_custom_call.1} parent=1 // pred_fallthru
      _
    // Predicated region
    $region30: #{tpu_custom_call.1} parent=1 // pred_check
      _
    $region31: #{tpu_custom_call.1} parent=1 // pred_check_branch
      %77 = sbr.rel (0) target = $region33
    $region32: #{tpu_custom_call.1} parent=1 // pred_region
      %78 = dma.done [#allocation10], 1024
    $region33: #{tpu_custom_call.1} parent=1 // pred_fallthru
      _
    // Predicated region
    $region34: #{tpu_custom_call.1} parent=1 // pred_check
      _
    $region35: #{tpu_custom_call.1} parent=1 // pred_check_branch
      %80 = sbr.rel (0) target = $region37
    $region36: #{tpu_custom_call.1} parent=1 // pred_region
      %81 = dma.done [#allocation10], 128
    $region37: #{tpu_custom_call.1} parent=1 // pred_fallthru
      _
    // Predicated region
    $region38: #{tpu_custom_call.1} parent=1 // pred_check
      _
    $region39: #{tpu_custom_call.1} parent=1 // pred_check_branch
      %83 = sbr.rel (0) target = $region41
    $region40: #{tpu_custom_call.1} parent=1 // pred_region
      %84 = dma.done [#allocation13], 1024
    $region41: #{tpu_custom_call.1} parent=1 // pred_fallthru
      _
    %v86 = vld [vmem:[%s2] sm:$0x1]
    %v87 = vld [vmem:[#allocation9] sm:$0xf]
    %v88 = vld [vmem:[#allocation9 + $0x4] sm:$0xf]
    %v89 = vld [vmem:[#allocation9 + $0x8] sm:$0xf]
    %v90 = vld [vmem:[#allocation9 + $0xc] sm:$0xf]
    %v91 = vld [vmem:[#allocation9 + $0x10] sm:$0xf]
    %v92 = vld [vmem:[#allocation9 + $0x14] sm:$0xf]
    %v93 = vld [vmem:[#allocation9 + $0x18] sm:$0xf]
    %v94 = vld [vmem:[#allocation9 + $0x1c] sm:$0xf]
    %v95 = vld [vmem:[#allocation9 + $0x20] sm:$0xf]
    %v96 = vld [vmem:[#allocation9 + $0x24] sm:$0xf]
    %v97 = vld [vmem:[#allocation9 + $0x28] sm:$0xf]
    %v98 = vld [vmem:[#allocation9 + $0x2c] sm:$0xf]
    %v99 = vld [vmem:[#allocation9 + $0x30] sm:$0xf]
    %v100 = vld [vmem:[#allocation9 + $0x34] sm:$0xf]
    %v101 = vld [vmem:[#allocation9 + $0x38] sm:$0xf]
    %v102 = vld [vmem:[#allocation9 + $0x3c] sm:$0xf]
    %v103 = vld [vmem:[#allocation11] sm:$0xff]
    %v104 = vpack.c.bf16 %v103, %v103
    %s105 = sld [smem:[#allocation5]]
    %s106 = scalar_lea.vmem [#allocation6], %s105
    %v107 = vld [vmem:[%s106] sm:$0x1]
    %108 = vst [vmem:[#allocation3] sm:$0x1] %v107
    %s109 = sld [smem:[#allocation5 + $0x1]]
    %s110 = scalar_lea.vmem [#allocation6], %s109
    %v111 = vld [vmem:[%s110] sm:$0x1]
    %112 = vst [vmem:[#allocation3 + $0x1] sm:$0x1] %v111
    %s113 = sld [smem:[#allocation5 + $0x2]]
    %s114 = scalar_lea.vmem [#allocation6], %s113
    %v115 = vld [vmem:[%s114] sm:$0x1]
    %116 = vst [vmem:[#allocation3 + $0x2] sm:$0x1] %v115
    %s117 = sld [smem:[#allocation5 + $0x3]]
    %s118 = scalar_lea.vmem [#allocation6], %s117
    %v119 = vld [vmem:[%s118] sm:$0x1]
    %120 = vst [vmem:[#allocation3 + $0x3] sm:$0x1] %v119
    %s121 = sld [smem:[#allocation5 + $0x4]]
    %s122 = scalar_lea.vmem [#allocation6], %s121
    %v123 = vld [vmem:[%s122] sm:$0x1]
    %124 = vst [vmem:[#allocation3 + $0x4] sm:$0x1] %v123
    %s125 = sld [smem:[#allocation5 + $0x5]]
    %s126 = scalar_lea.vmem [#allocation6], %s125
    %v127 = vld [vmem:[%s126] sm:$0x1]
    %128 = vst [vmem:[#allocation3 + $0x5] sm:$0x1] %v127
    %s129 = sld [smem:[#allocation5 + $0x6]]
    %s130 = scalar_lea.vmem [#allocation6], %s129
    %v131 = vld [vmem:[%s130] sm:$0x1]
    %132 = vst [vmem:[#allocation3 + $0x6] sm:$0x1] %v131
    %s133 = sld [smem:[#allocation5 + $0x7]]
    %s134 = scalar_lea.vmem [#allocation6], %s133
    %v135 = vld [vmem:[%s134] sm:$0x1]
    %136 = vst [vmem:[#allocation3 + $0x7] sm:$0x1] %v135
    %v137 = vld [vmem:[#allocation3] sm:$0xff]
    %v139 = vlaneseq
    %v140 = vshrl.u32 %v139, 7
    %v141 = vsub.s32 0, %v140
    %v142 = vrot.slane %v86, %v141
    %v144 = vadd.f32 %v137, %v142
    %v161 = vunpack.c.l.b16 %v87
    %v162 = vunpack.c.l.b16 %v88
    %v163 = vunpack.c.l.b16 %v89
    %v164 = vunpack.c.l.b16 %v90
    %v165 = vunpack.c.l.b16 %v91
    %v166 = vunpack.c.l.b16 %v92
    %v167 = vunpack.c.l.b16 %v93
    %v168 = vunpack.c.l.b16 %v94
    %v169 = vunpack.c.l.b16 %v95
    %v170 = vunpack.c.l.b16 %v96
    %v171 = vunpack.c.l.b16 %v97
    %v172 = vunpack.c.l.b16 %v98
    %v173 = vunpack.c.l.b16 %v99
    %v174 = vunpack.c.l.b16 %v100
    %v175 = vunpack.c.l.b16 %v101
    %v176 = vunpack.c.l.b16 %v102
    %v177 = vpack.c.b16 %v162, %v161
    %v178 = vpack.c.b16 %v164, %v163
    %v179 = vpack.c.b16 %v166, %v165
    %v180 = vpack.c.b16 %v168, %v167
    %v181 = vpack.c.b16 %v170, %v169
    %v182 = vpack.c.b16 %v172, %v171
    %v183 = vpack.c.b16 %v174, %v173
    %v184 = vpack.c.b16 %v176, %v175
    %193 = vmatprep.subr.bf16.mxu0 0
    %194 = vmatpush1.bf16.msra.mxu0 %v184
    %195 = vmatprep.subr.bf16.mxu0 0
    %196 = vmatpush1.bf16.msra.mxu0 %v183
    %197 = vmatprep.subr.bf16.mxu0 0
    %198 = vmatpush1.bf16.msra.mxu0 %v182
    %199 = vmatprep.subr.bf16.mxu0 0
    %200 = vmatpush1.bf16.msra.mxu0 %v181
    %201 = vmatprep.subr.bf16.mxu0 0
    %202 = vmatpush1.bf16.msra.mxu0 %v180
    %203 = vmatprep.subr.bf16.mxu0 0
    %204 = vmatpush1.bf16.msra.mxu0 %v179
    %205 = vmatprep.subr.bf16.mxu0 0
    %206 = vmatpush1.bf16.msra.mxu0 %v178
    %207 = vmatprep.subr.bf16.mxu0 0
    %208 = vmatpush1.bf16.msra.mxu0 %v177
    %209 = vmatprep.subr.bf16.mxu0 0
    %210 = vmatpush2.bf16.msra.mxu0 0
    %211 = vmatprep.subr.bf16.mxu0 0
    %212 = vmatpush2.bf16.msra.mxu0 0
    %213 = vmatprep.subr.bf16.mxu0 0
    %214 = vmatpush2.bf16.msra.mxu0 0
    %215 = vmatprep.subr.bf16.mxu0 0
    %216 = vmatpush2.bf16.msra.mxu0 0
    %217 = vmatprep.subr.bf16.mxu0 0
    %218 = vmatpush2.bf16.msra.mxu0 0
    %219 = vmatprep.subr.bf16.mxu0 0
    %220 = vmatpush2.bf16.msra.mxu0 0
    %221 = vmatprep.subr.bf16.mxu0 0
    %222 = vmatpush2.bf16.msra.mxu0 0
    %223 = vmatprep.subr.bf16.mxu0 0
    %224 = vmatpush2.bf16.msra.mxu0 0
    %225 = vmatprep.mubr.bf16.mxu0 0
    %226 = vmatmul.mubr.bf16.gmra.mxu0 %v104
    %v227 = vpop.f32.mrf.mxu0
    %v228 = vadd.f32 0.0, %v227
    %v229 = vpop.f32.mrf.mxu0
    %v230 = vpop.f32.mrf.mxu0
    %v231 = vpop.f32.mrf.mxu0
    %232 = vdwg.mxu0
    %v233 = vadd.f32 %v144, %v228
    %v234 = vtanh.pop %v233
    %v235 = vpack.c.bf16 %v234, %v234
    %236 = vst [vmem:[#allocation2] sm:$0xf] %v235
    %s237 = sld [smem:[#allocation5 + $0x8]]
    %s238 = scalar_lea.vmem [#allocation6], %s237
    %v239 = vld [vmem:[%s238] sm:$0x1]
    %240 = vst [vmem:[#allocation3] sm:$0x1] %v239
    %s241 = sld [smem:[#allocation5 + $0x9]]
    %s242 = scalar_lea.vmem [#allocation6], %s241
    %v243 = vld [vmem:[%s242] sm:$0x1]
    %244 = vst [vmem:[#allocation3 + $0x1] sm:$0x1] %v243
    %s245 = sld [smem:[#allocation5 + $0xa]]
    %s246 = scalar_lea.vmem [#allocation6], %s245
    %v247 = vld [vmem:[%s246] sm:$0x1]
    %248 = vst [vmem:[#allocation3 + $0x2] sm:$0x1] %v247
    %s249 = sld [smem:[#allocation5 + $0xb]]
    %s250 = scalar_lea.vmem [#allocation6], %s249
    %v251 = vld [vmem:[%s250] sm:$0x1]
    %252 = vst [vmem:[#allocation3 + $0x3] sm:$0x1] %v251
    %s253 = sld [smem:[#allocation5 + $0xc]]
    %s254 = scalar_lea.vmem [#allocation6], %s253
    %v255 = vld [vmem:[%s254] sm:$0x1]
    %256 = vst [vmem:[#allocation3 + $0x4] sm:$0x1] %v255
    %s257 = sld [smem:[#allocation5 + $0xd]]
    %s258 = scalar_lea.vmem [#allocation6], %s257
    %v259 = vld [vmem:[%s258] sm:$0x1]
    %260 = vst [vmem:[#allocation3 + $0x5] sm:$0x1] %v259
    %s261 = sld [smem:[#allocation5 + $0xe]]
    %s262 = scalar_lea.vmem [#allocation6], %s261
    %v263 = vld [vmem:[%s262] sm:$0x1]
    %264 = vst [vmem:[#allocation3 + $0x6] sm:$0x1] %v263
    %s265 = sld [smem:[#allocation5 + $0xf]]
    %s266 = scalar_lea.vmem [#allocation6], %s265
    %v267 = vld [vmem:[%s266] sm:$0x1]
    %268 = vst [vmem:[#allocation3 + $0x7] sm:$0x1] %v267
    %v269 = vld [vmem:[#allocation3] sm:$0xff]
    %v270 = vadd.f32 %v269, %v142
    %271 = vmatprep.subr.bf16.mxu0 0
    %272 = vmatpush1.bf16.msra.mxu0 %v184
    %273 = vmatprep.subr.bf16.mxu0 0
    %274 = vmatpush1.bf16.msra.mxu0 %v183
    %275 = vmatprep.subr.bf16.mxu0 0
    %276 = vmatpush1.bf16.msra.mxu0 %v182
    %277 = vmatprep.subr.bf16.mxu0 0
    %278 = vmatpush1.bf16.msra.mxu0 %v181
    %279 = vmatprep.subr.bf16.mxu0 0
    %280 = vmatpush1.bf16.msra.mxu0 %v180
    %281 = vmatprep.subr.bf16.mxu0 0
    %282 = vmatpush1.bf16.msra.mxu0 %v179
    %283 = vmatprep.subr.bf16.mxu0 0
    %284 = vmatpush1.bf16.msra.mxu0 %v178
    %285 = vmatprep.subr.bf16.mxu0 0
    %286 = vmatpush1.bf16.msra.mxu0 %v177
    %287 = vmatprep.subr.bf16.mxu0 0
    %288 = vmatpush2.bf16.msra.mxu0 0
    %289 = vmatprep.subr.bf16.mxu0 0
    %290 = vmatpush2.bf16.msra.mxu0 0
    %291 = vmatprep.subr.bf16.mxu0 0
    %292 = vmatpush2.bf16.msra.mxu0 0
    %293 = vmatprep.subr.bf16.mxu0 0
    %294 = vmatpush2.bf16.msra.mxu0 0
    %295 = vmatprep.subr.bf16.mxu0 0
    %296 = vmatpush2.bf16.msra.mxu0 0
    %297 = vmatprep.subr.bf16.mxu0 0
    %298 = vmatpush2.bf16.msra.mxu0 0
    %299 = vmatprep.subr.bf16.mxu0 0
    %300 = vmatpush2.bf16.msra.mxu0 0
    %301 = vmatprep.subr.bf16.mxu0 0
    %302 = vmatpush2.bf16.msra.mxu0 0
    %303 = vmatprep.mubr.bf16.mxu0 0
    %304 = vmatmul.mubr.bf16.gmra.mxu0 %v235
    %v305 = vpop.f32.mrf.mxu0
    %v306 = vadd.f32 0.0, %v305
    %v307 = vpop.f32.mrf.mxu0
    %v308 = vpop.f32.mrf.mxu0
    %v309 = vpop.f32.mrf.mxu0
    %310 = vdwg.mxu0
    %v311 = vadd.f32 %v270, %v306
    %v312 = vtanh.pop %v311
    %v313 = vpack.c.bf16 %v312, %v312
    %314 = vst [vmem:[#allocation2 + $0x4] sm:$0xf] %v313
    %s315 = sld [smem:[#allocation5 + $0x10]]
    %s316 = scalar_lea.vmem [#allocation6], %s315
    %v317 = vld [vmem:[%s316] sm:$0x1]
    %318 = vst [vmem:[#allocation3] sm:$0x1] %v317
    %s319 = sld [smem:[#allocation5 + $0x11]]
    %s320 = scalar_lea.vmem [#allocation6], %s319
    %v321 = vld [vmem:[%s320] sm:$0x1]
    %322 = vst [vmem:[#allocation3 + $0x1] sm:$0x1] %v321
    %s323 = sld [smem:[#allocation5 + $0x12]]
    %s324 = scalar_lea.vmem [#allocation6], %s323
    %v325 = vld [vmem:[%s324] sm:$0x1]
    %326 = vst [vmem:[#allocation3 + $0x2] sm:$0x1] %v325
    %s327 = sld [smem:[#allocation5 + $0x13]]
    %s328 = scalar_lea.vmem [#allocation6], %s327
    %v329 = vld [vmem:[%s328] sm:$0x1]
    %330 = vst [vmem:[#allocation3 + $0x3] sm:$0x1] %v329
    %s331 = sld [smem:[#allocation5 + $0x14]]
    %s332 = scalar_lea.vmem [#allocation6], %s331
    %v333 = vld [vmem:[%s332] sm:$0x1]
    %334 = vst [vmem:[#allocation3 + $0x4] sm:$0x1] %v333
    %s335 = sld [smem:[#allocation5 + $0x15]]
    %s336 = scalar_lea.vmem [#allocation6], %s335
    %v337 = vld [vmem:[%s336] sm:$0x1]
    %338 = vst [vmem:[#allocation3 + $0x5] sm:$0x1] %v337
    %s339 = sld [smem:[#allocation5 + $0x16]]
    %s340 = scalar_lea.vmem [#allocation6], %s339
    %v341 = vld [vmem:[%s340] sm:$0x1]
    %342 = vst [vmem:[#allocation3 + $0x6] sm:$0x1] %v341
    %s343 = sld [smem:[#allocation5 + $0x17]]
    %s344 = scalar_lea.vmem [#allocation6], %s343
    %v345 = vld [vmem:[%s344] sm:$0x1]
    %346 = vst [vmem:[#allocation3 + $0x7] sm:$0x1] %v345
    %v347 = vld [vmem:[#allocation3] sm:$0xff]
    %v348 = vadd.f32 %v347, %v142
    %349 = vmatprep.subr.bf16.mxu0 0
    %350 = vmatpush1.bf16.msra.mxu0 %v184
    %351 = vmatprep.subr.bf16.mxu0 0
    %352 = vmatpush1.bf16.msra.mxu0 %v183
    %353 = vmatprep.subr.bf16.mxu0 0
    %354 = vmatpush1.bf16.msra.mxu0 %v182
    %355 = vmatprep.subr.bf16.mxu0 0
    %356 = vmatpush1.bf16.msra.mxu0 %v181
    %357 = vmatprep.subr.bf16.mxu0 0
    %358 = vmatpush1.bf16.msra.mxu0 %v180
    %359 = vmatprep.subr.bf16.mxu0 0
    %360 = vmatpush1.bf16.msra.mxu0 %v179
    %361 = vmatprep.subr.bf16.mxu0 0
    %362 = vmatpush1.bf16.msra.mxu0 %v178
    %363 = vmatprep.subr.bf16.mxu0 0
    %364 = vmatpush1.bf16.msra.mxu0 %v177
    %365 = vmatprep.subr.bf16.mxu0 0
    %366 = vmatpush2.bf16.msra.mxu0 0
    %367 = vmatprep.subr.bf16.mxu0 0
    %368 = vmatpush2.bf16.msra.mxu0 0
    %369 = vmatprep.subr.bf16.mxu0 0
    %370 = vmatpush2.bf16.msra.mxu0 0
    %371 = vmatprep.subr.bf16.mxu0 0
    %372 = vmatpush2.bf16.msra.mxu0 0
    %373 = vmatprep.subr.bf16.mxu0 0
    %374 = vmatpush2.bf16.msra.mxu0 0
    %375 = vmatprep.subr.bf16.mxu0 0
    %376 = vmatpush2.bf16.msra.mxu0 0
    %377 = vmatprep.subr.bf16.mxu0 0
    %378 = vmatpush2.bf16.msra.mxu0 0
    %379 = vmatprep.subr.bf16.mxu0 0
    %380 = vmatpush2.bf16.msra.mxu0 0
    %381 = vmatprep.mubr.bf16.mxu0 0
    %382 = vmatmul.mubr.bf16.gmra.mxu0 %v313
    %v383 = vpop.f32.mrf.mxu0
    %v384 = vadd.f32 0.0, %v383
    %v385 = vpop.f32.mrf.mxu0
    %v386 = vpop.f32.mrf.mxu0
    %v387 = vpop.f32.mrf.mxu0
    %388 = vdwg.mxu0
    %v389 = vadd.f32 %v348, %v384
    %v390 = vtanh.pop %v389
    %v391 = vpack.c.bf16 %v390, %v390
    %392 = vst [vmem:[#allocation2 + $0x8] sm:$0xf] %v391
    %s393 = sld [smem:[#allocation5 + $0x18]]
    %s394 = scalar_lea.vmem [#allocation6], %s393
    %v395 = vld [vmem:[%s394] sm:$0x1]
    %396 = vst [vmem:[#allocation3] sm:$0x1] %v395
    %s397 = sld [smem:[#allocation5 + $0x19]]
    %s398 = scalar_lea.vmem [#allocation6], %s397
    %v399 = vld [vmem:[%s398] sm:$0x1]
    %400 = vst [vmem:[#allocation3 + $0x1] sm:$0x1] %v399
    %s401 = sld [smem:[#allocation5 + $0x1a]]
    %s402 = scalar_lea.vmem [#allocation6], %s401
    %v403 = vld [vmem:[%s402] sm:$0x1]
    %404 = vst [vmem:[#allocation3 + $0x2] sm:$0x1] %v403
    %s405 = sld [smem:[#allocation5 + $0x1b]]
    %s406 = scalar_lea.vmem [#allocation6], %s405
    %v407 = vld [vmem:[%s406] sm:$0x1]
    %408 = vst [vmem:[#allocation3 + $0x3] sm:$0x1] %v407
    %s409 = sld [smem:[#allocation5 + $0x1c]]
    %s410 = scalar_lea.vmem [#allocation6], %s409
    %v411 = vld [vmem:[%s410] sm:$0x1]
    %412 = vst [vmem:[#allocation3 + $0x4] sm:$0x1] %v411
    %s413 = sld [smem:[#allocation5 + $0x1d]]
    %s414 = scalar_lea.vmem [#allocation6], %s413
    %v415 = vld [vmem:[%s414] sm:$0x1]
    %416 = vst [vmem:[#allocation3 + $0x5] sm:$0x1] %v415
    %s417 = sld [smem:[#allocation5 + $0x1e]]
    %s418 = scalar_lea.vmem [#allocation6], %s417
    %v419 = vld [vmem:[%s418] sm:$0x1]
    %420 = vst [vmem:[#allocation3 + $0x6] sm:$0x1] %v419
    %s421 = sld [smem:[#allocation5 + $0x1f]]
    %s422 = scalar_lea.vmem [#allocation6], %s421
    %v423 = vld [vmem:[%s422] sm:$0x1]
    %424 = vst [vmem:[#allocation3 + $0x7] sm:$0x1] %v423
    %v425 = vld [vmem:[#allocation3] sm:$0xff]
    %v426 = vadd.f32 %v425, %v142
    %427 = vmatprep.subr.bf16.mxu0 0
    %428 = vmatpush1.bf16.msra.mxu0 %v184
    %429 = vmatprep.subr.bf16.mxu0 0
    %430 = vmatpush1.bf16.msra.mxu0 %v183
    %431 = vmatprep.subr.bf16.mxu0 0
    %432 = vmatpush1.bf16.msra.mxu0 %v182
    %433 = vmatprep.subr.bf16.mxu0 0
    %434 = vmatpush1.bf16.msra.mxu0 %v181
    %435 = vmatprep.subr.bf16.mxu0 0
    %436 = vmatpush1.bf16.msra.mxu0 %v180
    %437 = vmatprep.subr.bf16.mxu0 0
    %438 = vmatpush1.bf16.msra.mxu0 %v179
    %439 = vmatprep.subr.bf16.mxu0 0
    %440 = vmatpush1.bf16.msra.mxu0 %v178
    %441 = vmatprep.subr.bf16.mxu0 0
    %442 = vmatpush1.bf16.msra.mxu0 %v177
    %443 = vmatprep.subr.bf16.mxu0 0
    %444 = vmatpush2.bf16.msra.mxu0 0
    %445 = vmatprep.subr.bf16.mxu0 0
    %446 = vmatpush2.bf16.msra.mxu0 0
    %447 = vmatprep.subr.bf16.mxu0 0
    %448 = vmatpush2.bf16.msra.mxu0 0
    %449 = vmatprep.subr.bf16.mxu0 0
    %450 = vmatpush2.bf16.msra.mxu0 0
    %451 = vmatprep.subr.bf16.mxu0 0
    %452 = vmatpush2.bf16.msra.mxu0 0
    %453 = vmatprep.subr.bf16.mxu0 0
    %454 = vmatpush2.bf16.msra.mxu0 0
    %455 = vmatprep.subr.bf16.mxu0 0
    %456 = vmatpush2.bf16.msra.mxu0 0
    %457 = vmatprep.subr.bf16.mxu0 0
    %458 = vmatpush2.bf16.msra.mxu0 0
    %459 = vmatprep.mubr.bf16.mxu0 0
    %460 = vmatmul.mubr.bf16.gmra.mxu0 %v391
    %v461 = vpop.f32.mrf.mxu0
    %v462 = vadd.f32 0.0, %v461
    %v463 = vpop.f32.mrf.mxu0
    %v464 = vpop.f32.mrf.mxu0
    %v465 = vpop.f32.mrf.mxu0
    %466 = vdwg.mxu0
    %v467 = vadd.f32 %v426, %v462
    %v468 = vtanh.pop %v467
    %v469 = vpack.c.bf16 %v468, %v468
    %470 = vst [vmem:[#allocation2 + $0xc] sm:$0xf] %v469
    %s471 = sld [smem:[#allocation5 + $0x20]]
    %s472 = scalar_lea.vmem [#allocation6], %s471
    %v473 = vld [vmem:[%s472] sm:$0x1]
    %474 = vst [vmem:[#allocation3] sm:$0x1] %v473
    %s475 = sld [smem:[#allocation5 + $0x21]]
    %s476 = scalar_lea.vmem [#allocation6], %s475
    %v477 = vld [vmem:[%s476] sm:$0x1]
    %478 = vst [vmem:[#allocation3 + $0x1] sm:$0x1] %v477
    %s479 = sld [smem:[#allocation5 + $0x22]]
    %s480 = scalar_lea.vmem [#allocation6], %s479
    %v481 = vld [vmem:[%s480] sm:$0x1]
    %482 = vst [vmem:[#allocation3 + $0x2] sm:$0x1] %v481
    %s483 = sld [smem:[#allocation5 + $0x23]]
    %s484 = scalar_lea.vmem [#allocation6], %s483
    %v485 = vld [vmem:[%s484] sm:$0x1]
    %486 = vst [vmem:[#allocation3 + $0x3] sm:$0x1] %v485
    %s487 = sld [smem:[#allocation5 + $0x24]]
    %s488 = scalar_lea.vmem [#allocation6], %s487
    %v489 = vld [vmem:[%s488] sm:$0x1]
    %490 = vst [vmem:[#allocation3 + $0x4] sm:$0x1] %v489
    %s491 = sld [smem:[#allocation5 + $0x25]]
    %s492 = scalar_lea.vmem [#allocation6], %s491
    %v493 = vld [vmem:[%s492] sm:$0x1]
    %494 = vst [vmem:[#allocation3 + $0x5] sm:$0x1] %v493
    %s495 = sld [smem:[#allocation5 + $0x26]]
    %s496 = scalar_lea.vmem [#allocation6], %s495
    %v497 = vld [vmem:[%s496] sm:$0x1]
    %498 = vst [vmem:[#allocation3 + $0x6] sm:$0x1] %v497
    %s499 = sld [smem:[#allocation5 + $0x27]]
    %s500 = scalar_lea.vmem [#allocation6], %s499
    %v501 = vld [vmem:[%s500] sm:$0x1]
    %502 = vst [vmem:[#allocation3 + $0x7] sm:$0x1] %v501
    %v503 = vld [vmem:[#allocation3] sm:$0xff]
    %v504 = vadd.f32 %v503, %v142
    %505 = vmatprep.subr.bf16.mxu0 0
    %506 = vmatpush1.bf16.msra.mxu0 %v184
    %507 = vmatprep.subr.bf16.mxu0 0
    %508 = vmatpush1.bf16.msra.mxu0 %v183
    %509 = vmatprep.subr.bf16.mxu0 0
    %510 = vmatpush1.bf16.msra.mxu0 %v182
    %511 = vmatprep.subr.bf16.mxu0 0
    %512 = vmatpush1.bf16.msra.mxu0 %v181
    %513 = vmatprep.subr.bf16.mxu0 0
    %514 = vmatpush1.bf16.msra.mxu0 %v180
    %515 = vmatprep.subr.bf16.mxu0 0
    %516 = vmatpush1.bf16.msra.mxu0 %v179
    %517 = vmatprep.subr.bf16.mxu0 0
    %518 = vmatpush1.bf16.msra.mxu0 %v178
    %519 = vmatprep.subr.bf16.mxu0 0
    %520 = vmatpush1.bf16.msra.mxu0 %v177
    %521 = vmatprep.subr.bf16.mxu0 0
    %522 = vmatpush2.bf16.msra.mxu0 0
    %523 = vmatprep.subr.bf16.mxu0 0
    %524 = vmatpush2.bf16.msra.mxu0 0
    %525 = vmatprep.subr.bf16.mxu0 0
    %526 = vmatpush2.bf16.msra.mxu0 0
    %527 = vmatprep.subr.bf16.mxu0 0
    %528 = vmatpush2.bf16.msra.mxu0 0
    %529 = vmatprep.subr.bf16.mxu0 0
    %530 = vmatpush2.bf16.msra.mxu0 0
    %531 = vmatprep.subr.bf16.mxu0 0
    %532 = vmatpush2.bf16.msra.mxu0 0
    %533 = vmatprep.subr.bf16.mxu0 0
    %534 = vmatpush2.bf16.msra.mxu0 0
    %535 = vmatprep.subr.bf16.mxu0 0
    %536 = vmatpush2.bf16.msra.mxu0 0
    %537 = vmatprep.mubr.bf16.mxu0 0
    %538 = vmatmul.mubr.bf16.gmra.mxu0 %v469
    %v539 = vpop.f32.mrf.mxu0
    %v540 = vadd.f32 0.0, %v539
    %v541 = vpop.f32.mrf.mxu0
    %v542 = vpop.f32.mrf.mxu0
    %v543 = vpop.f32.mrf.mxu0
    %544 = vdwg.mxu0
    %v545 = vadd.f32 %v504, %v540
    %v546 = vtanh.pop %v545
    %v547 = vpack.c.bf16 %v546, %v546
    %548 = vst [vmem:[#allocation2 + $0x10] sm:$0xf] %v547
    %s549 = sld [smem:[#allocation5 + $0x28]]
    %s550 = scalar_lea.vmem [#allocation6], %s549
    %v551 = vld [vmem:[%s550] sm:$0x1]
    %552 = vst [vmem:[#allocation3] sm:$0x1] %v551
    %s553 = sld [smem:[#allocation5 + $0x29]]
    %s554 = scalar_lea.vmem [#allocation6], %s553
    %v555 = vld [vmem:[%s554] sm:$0x1]
    %556 = vst [vmem:[#allocation3 + $0x1] sm:$0x1] %v555
    %s557 = sld [smem:[#allocation5 + $0x2a]]
    %s558 = scalar_lea.vmem [#allocation6], %s557
    %v559 = vld [vmem:[%s558] sm:$0x1]
    %560 = vst [vmem:[#allocation3 + $0x2] sm:$0x1] %v559
    %s561 = sld [smem:[#allocation5 + $0x2b]]
    %s562 = scalar_lea.vmem [#allocation6], %s561
    %v563 = vld [vmem:[%s562] sm:$0x1]
    %564 = vst [vmem:[#allocation3 + $0x3] sm:$0x1] %v563
    %s565 = sld [smem:[#allocation5 + $0x2c]]
    %s566 = scalar_lea.vmem [#allocation6], %s565
    %v567 = vld [vmem:[%s566] sm:$0x1]
    %568 = vst [vmem:[#allocation3 + $0x4] sm:$0x1] %v567
    %s569 = sld [smem:[#allocation5 + $0x2d]]
    %s570 = scalar_lea.vmem [#allocation6], %s569
    %v571 = vld [vmem:[%s570] sm:$0x1]
    %572 = vst [vmem:[#allocation3 + $0x5] sm:$0x1] %v571
    %s573 = sld [smem:[#allocation5 + $0x2e]]
    %s574 = scalar_lea.vmem [#allocation6], %s573
    %v575 = vld [vmem:[%s574] sm:$0x1]
    %576 = vst [vmem:[#allocation3 + $0x6] sm:$0x1] %v575
    %s577 = sld [smem:[#allocation5 + $0x2f]]
    %s578 = scalar_lea.vmem [#allocation6], %s577
    %v579 = vld [vmem:[%s578] sm:$0x1]
    %580 = vst [vmem:[#allocation3 + $0x7] sm:$0x1] %v579
    %v581 = vld [vmem:[#allocation3] sm:$0xff]
    %v582 = vadd.f32 %v581, %v142
    %583 = vmatprep.subr.bf16.mxu0 0
    %584 = vmatpush1.bf16.msra.mxu0 %v184
    %585 = vmatprep.subr.bf16.mxu0 0
    %586 = vmatpush1.bf16.msra.mxu0 %v183
    %587 = vmatprep.subr.bf16.mxu0 0
    %588 = vmatpush1.bf16.msra.mxu0 %v182
    %589 = vmatprep.subr.bf16.mxu0 0
    %590 = vmatpush1.bf16.msra.mxu0 %v181
    %591 = vmatprep.subr.bf16.mxu0 0
    %592 = vmatpush1.bf16.msra.mxu0 %v180
    %593 = vmatprep.subr.bf16.mxu0 0
    %594 = vmatpush1.bf16.msra.mxu0 %v179
    %595 = vmatprep.subr.bf16.mxu0 0
    %596 = vmatpush1.bf16.msra.mxu0 %v178
    %597 = vmatprep.subr.bf16.mxu0 0
    %598 = vmatpush1.bf16.msra.mxu0 %v177
    %599 = vmatprep.subr.bf16.mxu0 0
    %600 = vmatpush2.bf16.msra.mxu0 0
    %601 = vmatprep.subr.bf16.mxu0 0
    %602 = vmatpush2.bf16.msra.mxu0 0
    %603 = vmatprep.subr.bf16.mxu0 0
    %604 = vmatpush2.bf16.msra.mxu0 0
    %605 = vmatprep.subr.bf16.mxu0 0
    %606 = vmatpush2.bf16.msra.mxu0 0
    %607 = vmatprep.subr.bf16.mxu0 0
    %608 = vmatpush2.bf16.msra.mxu0 0
    %609 = vmatprep.subr.bf16.mxu0 0
    %610 = vmatpush2.bf16.msra.mxu0 0
    %611 = vmatprep.subr.bf16.mxu0 0
    %612 = vmatpush2.bf16.msra.mxu0 0
    %613 = vmatprep.subr.bf16.mxu0 0
    %614 = vmatpush2.bf16.msra.mxu0 0
    %615 = vmatprep.mubr.bf16.mxu0 0
    %616 = vmatmul.mubr.bf16.gmra.mxu0 %v547
    %v617 = vpop.f32.mrf.mxu0
    %v618 = vadd.f32 0.0, %v617
    %v619 = vpop.f32.mrf.mxu0
    %v620 = vpop.f32.mrf.mxu0
    %v621 = vpop.f32.mrf.mxu0
    %622 = vdwg.mxu0
    %v623 = vadd.f32 %v582, %v618
    %v624 = vtanh.pop %v623
    %v625 = vpack.c.bf16 %v624, %v624
    %626 = vst [vmem:[#allocation2 + $0x14] sm:$0xf] %v625
    %s627 = sld [smem:[#allocation5 + $0x30]]
    %s628 = scalar_lea.vmem [#allocation6], %s627
    %v629 = vld [vmem:[%s628] sm:$0x1]
    %630 = vst [vmem:[#allocation3] sm:$0x1] %v629
    %s631 = sld [smem:[#allocation5 + $0x31]]
    %s632 = scalar_lea.vmem [#allocation6], %s631
    %v633 = vld [vmem:[%s632] sm:$0x1]
    %634 = vst [vmem:[#allocation3 + $0x1] sm:$0x1] %v633
    %s635 = sld [smem:[#allocation5 + $0x32]]
    %s636 = scalar_lea.vmem [#allocation6], %s635
    %v637 = vld [vmem:[%s636] sm:$0x1]
    %638 = vst [vmem:[#allocation3 + $0x2] sm:$0x1] %v637
    %s639 = sld [smem:[#allocation5 + $0x33]]
    %s640 = scalar_lea.vmem [#allocation6], %s639
    %v641 = vld [vmem:[%s640] sm:$0x1]
    %642 = vst [vmem:[#allocation3 + $0x3] sm:$0x1] %v641
    %s643 = sld [smem:[#allocation5 + $0x34]]
    %s644 = scalar_lea.vmem [#allocation6], %s643
    %v645 = vld [vmem:[%s644] sm:$0x1]
    %646 = vst [vmem:[#allocation3 + $0x4] sm:$0x1] %v645
    %s647 = sld [smem:[#allocation5 + $0x35]]
    %s648 = scalar_lea.vmem [#allocation6], %s647
    %v649 = vld [vmem:[%s648] sm:$0x1]
    %650 = vst [vmem:[#allocation3 + $0x5] sm:$0x1] %v649
    %s651 = sld [smem:[#allocation5 + $0x36]]
    %s652 = scalar_lea.vmem [#allocation6], %s651
    %v653 = vld [vmem:[%s652] sm:$0x1]
    %654 = vst [vmem:[#allocation3 + $0x6] sm:$0x1] %v653
    %s655 = sld [smem:[#allocation5 + $0x37]]
    %s656 = scalar_lea.vmem [#allocation6], %s655
    %v657 = vld [vmem:[%s656] sm:$0x1]
    %658 = vst [vmem:[#allocation3 + $0x7] sm:$0x1] %v657
    %v659 = vld [vmem:[#allocation3] sm:$0xff]
    %v660 = vadd.f32 %v659, %v142
    %661 = vmatprep.subr.bf16.mxu0 0
    %662 = vmatpush1.bf16.msra.mxu0 %v184
    %663 = vmatprep.subr.bf16.mxu0 0
    %664 = vmatpush1.bf16.msra.mxu0 %v183
    %665 = vmatprep.subr.bf16.mxu0 0
    %666 = vmatpush1.bf16.msra.mxu0 %v182
    %667 = vmatprep.subr.bf16.mxu0 0
    %668 = vmatpush1.bf16.msra.mxu0 %v181
    %669 = vmatprep.subr.bf16.mxu0 0
    %670 = vmatpush1.bf16.msra.mxu0 %v180
    %671 = vmatprep.subr.bf16.mxu0 0
    %672 = vmatpush1.bf16.msra.mxu0 %v179
    %673 = vmatprep.subr.bf16.mxu0 0
    %674 = vmatpush1.bf16.msra.mxu0 %v178
    %675 = vmatprep.subr.bf16.mxu0 0
    %676 = vmatpush1.bf16.msra.mxu0 %v177
    %677 = vmatprep.subr.bf16.mxu0 0
    %678 = vmatpush2.bf16.msra.mxu0 0
    %679 = vmatprep.subr.bf16.mxu0 0
    %680 = vmatpush2.bf16.msra.mxu0 0
    %681 = vmatprep.subr.bf16.mxu0 0
    %682 = vmatpush2.bf16.msra.mxu0 0
    %683 = vmatprep.subr.bf16.mxu0 0
    %684 = vmatpush2.bf16.msra.mxu0 0
    %685 = vmatprep.subr.bf16.mxu0 0
    %686 = vmatpush2.bf16.msra.mxu0 0
    %687 = vmatprep.subr.bf16.mxu0 0
    %688 = vmatpush2.bf16.msra.mxu0 0
    %689 = vmatprep.subr.bf16.mxu0 0
    %690 = vmatpush2.bf16.msra.mxu0 0
    %691 = vmatprep.subr.bf16.mxu0 0
    %692 = vmatpush2.bf16.msra.mxu0 0
    %693 = vmatprep.mubr.bf16.mxu0 0
    %694 = vmatmul.mubr.bf16.gmra.mxu0 %v625
    %v695 = vpop.f32.mrf.mxu0
    %v696 = vadd.f32 0.0, %v695
    %v697 = vpop.f32.mrf.mxu0
    %v698 = vpop.f32.mrf.mxu0
    %v699 = vpop.f32.mrf.mxu0
    %700 = vdwg.mxu0
    %v701 = vadd.f32 %v660, %v696
    %v702 = vtanh.pop %v701
    %v703 = vpack.c.bf16 %v702, %v702
    %704 = vst [vmem:[#allocation2 + $0x18] sm:$0xf] %v703
    %s705 = sld [smem:[#allocation5 + $0x38]]
    %s706 = scalar_lea.vmem [#allocation6], %s705
    %v707 = vld [vmem:[%s706] sm:$0x1]
    %708 = vst [vmem:[#allocation3] sm:$0x1] %v707
    %s709 = sld [smem:[#allocation5 + $0x39]]
    %s710 = scalar_lea.vmem [#allocation6], %s709
    %v711 = vld [vmem:[%s710] sm:$0x1]
    %712 = vst [vmem:[#allocation3 + $0x1] sm:$0x1] %v711
    %s713 = sld [smem:[#allocation5 + $0x3a]]
    %s714 = scalar_lea.vmem [#allocation6], %s713
    %v715 = vld [vmem:[%s714] sm:$0x1]
    %716 = vst [vmem:[#allocation3 + $0x2] sm:$0x1] %v715
    %s717 = sld [smem:[#allocation5 + $0x3b]]
    %s718 = scalar_lea.vmem [#allocation6], %s717
    %v719 = vld [vmem:[%s718] sm:$0x1]
    %720 = vst [vmem:[#allocation3 + $0x3] sm:$0x1] %v719
    %s721 = sld [smem:[#allocation5 + $0x3c]]
    %s722 = scalar_lea.vmem [#allocation6], %s721
    %v723 = vld [vmem:[%s722] sm:$0x1]
    %724 = vst [vmem:[#allocation3 + $0x4] sm:$0x1] %v723
    %s725 = sld [smem:[#allocation5 + $0x3d]]
    %s726 = scalar_lea.vmem [#allocation6], %s725
    %v727 = vld [vmem:[%s726] sm:$0x1]
    %728 = vst [vmem:[#allocation3 + $0x5] sm:$0x1] %v727
    %s729 = sld [smem:[#allocation5 + $0x3e]]
    %s730 = scalar_lea.vmem [#allocation6], %s729
    %v731 = vld [vmem:[%s730] sm:$0x1]
    %732 = vst [vmem:[#allocation3 + $0x6] sm:$0x1] %v731
    %s733 = sld [smem:[#allocation5 + $0x3f]]
    %s734 = scalar_lea.vmem [#allocation6], %s733
    %v735 = vld [vmem:[%s734] sm:$0x1]
    %736 = vst [vmem:[#allocation3 + $0x7] sm:$0x1] %v735
    %v737 = vld [vmem:[#allocation3] sm:$0xff]
    %v738 = vadd.f32 %v737, %v142
    %739 = vmatprep.subr.bf16.mxu0 0
    %740 = vmatpush1.bf16.msra.mxu0 %v184
    %741 = vmatprep.subr.bf16.mxu0 0
    %742 = vmatpush1.bf16.msra.mxu0 %v183
    %743 = vmatprep.subr.bf16.mxu0 0
    %744 = vmatpush1.bf16.msra.mxu0 %v182
    %745 = vmatprep.subr.bf16.mxu0 0
    %746 = vmatpush1.bf16.msra.mxu0 %v181
    %747 = vmatprep.subr.bf16.mxu0 0
    %748 = vmatpush1.bf16.msra.mxu0 %v180
    %749 = vmatprep.subr.bf16.mxu0 0
    %750 = vmatpush1.bf16.msra.mxu0 %v179
    %751 = vmatprep.subr.bf16.mxu0 0
    %752 = vmatpush1.bf16.msra.mxu0 %v178
    %753 = vmatprep.subr.bf16.mxu0 0
    %754 = vmatpush1.bf16.msra.mxu0 %v177
    %755 = vmatprep.subr.bf16.mxu0 0
    %756 = vmatpush2.bf16.msra.mxu0 0
    %757 = vmatprep.subr.bf16.mxu0 0
    %758 = vmatpush2.bf16.msra.mxu0 0
    %759 = vmatprep.subr.bf16.mxu0 0
    %760 = vmatpush2.bf16.msra.mxu0 0
    %761 = vmatprep.subr.bf16.mxu0 0
    %762 = vmatpush2.bf16.msra.mxu0 0
    %763 = vmatprep.subr.bf16.mxu0 0
    %764 = vmatpush2.bf16.msra.mxu0 0
    %765 = vmatprep.subr.bf16.mxu0 0
    %766 = vmatpush2.bf16.msra.mxu0 0
    %767 = vmatprep.subr.bf16.mxu0 0
    %768 = vmatpush2.bf16.msra.mxu0 0
    %769 = vmatprep.subr.bf16.mxu0 0
    %770 = vmatpush2.bf16.msra.mxu0 0
    %771 = vmatprep.mubr.bf16.mxu0 0
    %772 = vmatmul.mubr.bf16.gmra.mxu0 %v703
    %v773 = vpop.f32.mrf.mxu0
    %v774 = vadd.f32 0.0, %v773
    %v775 = vpop.f32.mrf.mxu0
    %v776 = vpop.f32.mrf.mxu0
    %v777 = vpop.f32.mrf.mxu0
    %778 = vdwg.mxu0
    %v779 = vadd.f32 %v738, %v774
    %v780 = vtanh.pop %v779
    %v781 = vpack.c.bf16 %v780, %v780
    %782 = vst [vmem:[#allocation2 + $0x1c] sm:$0xf] %v781
    %783 = vst [vmem:[#allocation15] sm:$0xff] %v780
    %v784 = vld [vmem:[#allocation2] sm:$0xf]
    %v785 = vld [vmem:[#allocation2 + $0x4] sm:$0xf]
    %v786 = vld [vmem:[#allocation2 + $0x8] sm:$0xf]
    %v787 = vld [vmem:[#allocation2 + $0xc] sm:$0xf]
    %v788 = vld [vmem:[#allocation2 + $0x10] sm:$0xf]
    %v789 = vld [vmem:[#allocation2 + $0x14] sm:$0xf]
    %v790 = vld [vmem:[#allocation2 + $0x18] sm:$0xf]
    %v791 = vld [vmem:[#allocation2 + $0x1c] sm:$0xf]
    %v792 = vld [vmem:[#allocation12] sm:$0xf]
    %v793 = vld [vmem:[#allocation12 + $0x4] sm:$0xf]
    %v794 = vld [vmem:[#allocation12 + $0x8] sm:$0xf]
    %v795 = vld [vmem:[#allocation12 + $0xc] sm:$0xf]
    %v796 = vld [vmem:[#allocation12 + $0x10] sm:$0xf]
    %v797 = vld [vmem:[#allocation12 + $0x14] sm:$0xf]
    %v798 = vld [vmem:[#allocation12 + $0x18] sm:$0xf]
    %v799 = vld [vmem:[#allocation12 + $0x1c] sm:$0xf]
    %v800 = vld [vmem:[#allocation12 + $0x20] sm:$0xf]
    %v801 = vld [vmem:[#allocation12 + $0x24] sm:$0xf]
    %v802 = vld [vmem:[#allocation12 + $0x28] sm:$0xf]
    %v803 = vld [vmem:[#allocation12 + $0x2c] sm:$0xf]
    %v804 = vld [vmem:[#allocation12 + $0x30] sm:$0xf]
    %v805 = vld [vmem:[#allocation12 + $0x34] sm:$0xf]
    %v806 = vld [vmem:[#allocation12 + $0x38] sm:$0xf]
    %v807 = vld [vmem:[#allocation12 + $0x3c] sm:$0xf]
    %v808 = vld [vmem:[%s6] sm:$0x1]
    %v810 = vlaneseq
    %v811 = vshrl.u32 %v810, 7
    %v812 = vsub.s32 0, %v811
    %v813 = vrot.slane %v808, %v812
    %v823 = vunpack.c.l.b16 %v784
    %v824 = vunpack.c.l.b16 %v785
    %v825 = vunpack.c.l.b16 %v786
    %v826 = vunpack.c.l.b16 %v787
    %v827 = vunpack.c.l.b16 %v788
    %v828 = vunpack.c.l.b16 %v789
    %v829 = vunpack.c.l.b16 %v790
    %v830 = vunpack.c.l.b16 %v791
    %v831 = vpack.c.b16 %v824, %v823
    %v832 = vpack.c.b16 %v826, %v825
    %v833 = vpack.c.b16 %v828, %v827
    %v834 = vpack.c.b16 %v830, %v829
    %v855 = vunpack.c.l.b16 %v792
    %v856 = vunpack.c.l.b16 %v793
    %v857 = vunpack.c.l.b16 %v794
    %v858 = vunpack.c.l.b16 %v795
    %v859 = vunpack.c.l.b16 %v796
    %v860 = vunpack.c.l.b16 %v797
    %v861 = vunpack.c.l.b16 %v798
    %v862 = vunpack.c.l.b16 %v799
    %v863 = vunpack.c.l.b16 %v800
    %v864 = vunpack.c.l.b16 %v801
    %v865 = vunpack.c.l.b16 %v802
    %v866 = vunpack.c.l.b16 %v803
    %v867 = vunpack.c.l.b16 %v804
    %v868 = vunpack.c.l.b16 %v805
    %v869 = vunpack.c.l.b16 %v806
    %v870 = vunpack.c.l.b16 %v807
    %v871 = vpack.c.b16 %v856, %v855
    %v872 = vpack.c.b16 %v858, %v857
    %v873 = vpack.c.b16 %v860, %v859
    %v874 = vpack.c.b16 %v862, %v861
    %v875 = vpack.c.b16 %v864, %v863
    %v876 = vpack.c.b16 %v866, %v865
    %v877 = vpack.c.b16 %v868, %v867
    %v878 = vpack.c.b16 %v870, %v869
    %887 = vmatprep.subr.bf16.mxu0 0
    %888 = vmatpush1.bf16.msra.mxu0 %v878
    %889 = vmatprep.subr.bf16.mxu0 0
    %890 = vmatpush1.bf16.msra.mxu0 %v877
    %891 = vmatprep.subr.bf16.mxu0 0
    %892 = vmatpush1.bf16.msra.mxu0 %v876
    %893 = vmatprep.subr.bf16.mxu0 0
    %894 = vmatpush1.bf16.msra.mxu0 %v875
    %895 = vmatprep.subr.bf16.mxu0 0
    %896 = vmatpush1.bf16.msra.mxu0 %v874
    %897 = vmatprep.subr.bf16.mxu0 0
    %898 = vmatpush1.bf16.msra.mxu0 %v873
    %899 = vmatprep.subr.bf16.mxu0 0
    %900 = vmatpush1.bf16.msra.mxu0 %v872
    %901 = vmatprep.subr.bf16.mxu0 0
    %902 = vmatpush1.bf16.msra.mxu0 %v871
    %903 = vmatprep.subr.bf16.mxu0 0
    %904 = vmatpush2.bf16.msra.mxu0 0
    %905 = vmatprep.subr.bf16.mxu0 0
    %906 = vmatpush2.bf16.msra.mxu0 0
    %907 = vmatprep.subr.bf16.mxu0 0
    %908 = vmatpush2.bf16.msra.mxu0 0
    %909 = vmatprep.subr.bf16.mxu0 0
    %910 = vmatpush2.bf16.msra.mxu0 0
    %911 = vmatprep.subr.bf16.mxu0 0
    %912 = vmatpush2.bf16.msra.mxu0 0
    %913 = vmatprep.subr.bf16.mxu0 0
    %914 = vmatpush2.bf16.msra.mxu0 0
    %915 = vmatprep.subr.bf16.mxu0 0
    %916 = vmatpush2.bf16.msra.mxu0 0
    %917 = vmatprep.subr.bf16.mxu0 0
    %918 = vmatpush2.bf16.msra.mxu0 0
    %919 = vmatprep.mubr.bf16.mxu0 0
    %920 = vmatmul.mubr.bf16.gmra.mxu0 %v831
    %v921 = vpop.f32.mrf.mxu0
    %v922 = vadd.f32 %v813, %v921
    %v923 = vpop.f32.mrf.mxu0
    %v924 = vpop.f32.mrf.mxu0
    %v925 = vadd.f32 %v813, %v924
    %v926 = vpop.f32.mrf.mxu0
    %927 = vmatprep.mubr.bf16.mxu0 0
    %928 = vmatmul.mubr.bf16.gmra.mxu0 %v832
    %v929 = vpop.f32.mrf.mxu0
    %v930 = vadd.f32 %v813, %v929
    %v931 = vpop.f32.mrf.mxu0
    %v932 = vpop.f32.mrf.mxu0
    %v933 = vadd.f32 %v813, %v932
    %v934 = vpop.f32.mrf.mxu0
    %935 = vmatprep.mubr.bf16.mxu0 0
    %936 = vmatmul.mubr.bf16.gmra.mxu0 %v833
    %v937 = vpop.f32.mrf.mxu0
    %v938 = vadd.f32 %v813, %v937
    %v939 = vpop.f32.mrf.mxu0
    %v940 = vpop.f32.mrf.mxu0
    %v941 = vadd.f32 %v813, %v940
    %v942 = vpop.f32.mrf.mxu0
    %943 = vmatprep.mubr.bf16.mxu0 0
    %944 = vmatmul.mubr.bf16.gmra.mxu0 %v834
    %v945 = vpop.f32.mrf.mxu0
    %v946 = vadd.f32 %v813, %v945
    %v947 = vpop.f32.mrf.mxu0
    %v948 = vpop.f32.mrf.mxu0
    %v949 = vadd.f32 %v813, %v948
    %v950 = vpop.f32.mrf.mxu0
    %951 = vdwg.mxu0
    %952 = vst [vmem:[#allocation14] sm:$0xff] %v922
    %953 = vst [vmem:[#allocation14 + $0x8] sm:$0xff] %v925
    %954 = vst [vmem:[#allocation14 + $0x10] sm:$0xff] %v930
    %955 = vst [vmem:[#allocation14 + $0x18] sm:$0xff] %v933
    %956 = vst [vmem:[#allocation14 + $0x20] sm:$0xff] %v938
    %957 = vst [vmem:[#allocation14 + $0x28] sm:$0xff] %v941
    %958 = vst [vmem:[#allocation14 + $0x30] sm:$0xff] %v946
    %959 = vst [vmem:[#allocation14 + $0x38] sm:$0xff] %v949
    // Predicated region
    $region42: #{tpu_custom_call.1} parent=1 // pred_check
      _
    $region43: #{tpu_custom_call.1} parent=1 // pred_check_branch
      %961 = sbr.rel (0) target = $region45
    $region44: #{tpu_custom_call.1} parent=1 // pred_region
      %s963 = ssub.s32 1024, 1024
      %964 = vsyncadd [#allocation8], %s963
      %s965 = sshll.u32 [#allocation14], 4
      %s966 = int_to_ptr.vmem [resolvable:$true] %s965
      %971 = dma.vmem_to_hbm [thread:$0]  %s966, 1024, %s7, [#allocation8], 128, 128, 8
    $region45: #{tpu_custom_call.1} parent=1 // pred_fallthru
      _
    // Predicated region
    $region46: #{tpu_custom_call.1} parent=1 // pred_check
      _
    $region47: #{tpu_custom_call.1} parent=1 // pred_check_branch
      %973 = sbr.rel (0) target = $region49
    $region48: #{tpu_custom_call.1} parent=1 // pred_region
      %s975 = ssub.s32 128, 128
      %976 = vsyncadd [#allocation16], %s975
      %s978 = sshll.u32 [#allocation15], 4
      %s979 = int_to_ptr.vmem [resolvable:$true] %s978
      %981 = dma.vmem_to_hbm [thread:$0]  %s979, 128, %s8, [#allocation16]
    $region49: #{tpu_custom_call.1} parent=1 // pred_fallthru
      _
    // Predicated region
    $region50: #{tpu_custom_call.1} parent=1 // pred_check
      _
    $region51: #{tpu_custom_call.1} parent=1 // pred_check_branch
      %983 = sbr.rel (0) target = $region53
    $region52: #{tpu_custom_call.1} parent=1 // pred_region
      %984 = dma.done [#allocation8], 1024
    $region53: #{tpu_custom_call.1} parent=1 // pred_fallthru
      _
    // Predicated region
    $region54: #{tpu_custom_call.1} parent=1 // pred_check
      _
    $region55: #{tpu_custom_call.1} parent=1 // pred_check_branch
      %986 = sbr.rel (0) target = $region57
    $region56: #{tpu_custom_call.1} parent=1 // pred_region
      %987 = dma.done [#allocation16], 128
    $region57: #{tpu_custom_call.1} parent=1 // pred_fallthru
      _
    %988 = vsyncpa [#allocation7], 1
    %989 = vsyncpa [#allocation10], 1
    %990 = vsyncpa [#allocation13], 1
    %991 = vsyncpa [#allocation8], 1
    %992 = vsyncpa [#allocation16], 1

</llo_original>
